<compile_context>
chip_gen: v7x
topology: tpu7x:2x2x1
jax: 0.10.0
libtpu: 0.0.40
codegen_flags: <defaults>
</compile_context>

<pallas_src>
import math
import functools

import jax
import jax.numpy as jnp
from jax.experimental import pallas as pl
from jax.experimental.pallas import tpu as pltpu


def _round_up(x, m):
    return ((x + m - 1) // m) * m


def _lstm_kernel(xg_ref, h0_ref, c0_ref, wh_hbm_ref, out_ref,
                 wh_vmem, h_scr, c_scr, dma_sem):
    """Grid = (batch_tiles, time_blocks).

    xg_ref : (Tc, Bb, 4Hp)  precomputed x @ Wx + b (gate order [i|f|o|g])
    h0_ref : (Bb, Hp)       initial hidden state for this batch tile
    c0_ref : (Bb, Hp)       initial cell state for this batch tile
    wh_hbm_ref : (Hp, 4Hp)  recurrent weights, left in HBM (pl.ANY)
    out_ref: (Tc, Bb, Hp)   hidden states for this time block
    """
    t_idx = pl.program_id(1)

    @pl.when(t_idx == 0)
    def _():
        # Single-buffered weight load, once per time sweep.  Overlap the DMA
        # with the initial-state copy, then wait.
        cp = pltpu.make_async_copy(wh_hbm_ref, wh_vmem, dma_sem)
        cp.start()
        h_scr[...] = h0_ref[...].astype(jnp.float32)
        c_scr[...] = c0_ref[...].astype(jnp.float32)
        cp.wait()

    wh = wh_vmem[...]                       # (Hp, 4Hp)
    tc = xg_ref.shape[0]
    hp = h_scr.shape[-1]

    def step(tt, carry):
        h, c = carry
        # Only the recurrent matmul is inside the loop; the x-projection and
        # bias are already folded into xg.
        gates = xg_ref[tt] + jnp.dot(
            h.astype(wh.dtype), wh, preferred_element_type=jnp.float32)
        # Gate order along 4Hp is [i | f | o | g]: one contiguous sigmoid for
        # the first three gates, one tanh for g (fewer EUP launches).
        sig = jax.nn.sigmoid(gates[:, : 3 * hp])
        g_t = jnp.tanh(gates[:, 3 * hp:])
        i_t = sig[:, :hp]
        f_t = sig[:, hp: 2 * hp]
        o_t = sig[:, 2 * hp: 3 * hp]
        c_new = g_t * i_t + c * f_t
        h_new = jnp.tanh(c_new) * o_t
        out_ref[tt] = h_new.astype(out_ref.dtype)   # lane-dense (Hp % 128 == 0)
        return h_new, c_new

    h_f, c_f = jax.lax.fori_loop(
        0, tc, step, (h_scr[...], c_scr[...]), unroll=(tc <= 8))
    h_scr[...] = h_f
    c_scr[...] = c_f


@functools.partial(
    jax.jit, static_argnames=("time_block", "batch_block", "matmul_dtype"))
def lstm_forward(embeds, params, h0=None, c0=None, time_block=8,
                 batch_block=None, matmul_dtype=jnp.float32):
    """embeds: (T, B, E); params: dict of the 12 per-gate tensors -> (T, B, H).

    h0/c0: optional (B, H) initial states (zeros if None), matching the
    module's `forward(embeds, states)` signature.
    """
    T, B, E = embeds.shape
    H = params["W_ih"].shape[0]
    Hp = _round_up(H, 128)                   # lane-dense hidden dim

    # --- Fuse the four gates into padded weight blocks, gate order [i, f, o, g].
    def pad_x(w):   # (E, H) -> (E, Hp)
        return jnp.pad(w, ((0, 0), (0, Hp - H)))

    def pad_h(w):   # (H, H) -> (Hp, Hp)
        return jnp.pad(w, ((0, Hp - H), (0, Hp - H)))

    def pad_b(v):   # (H,) -> (Hp,)
        return jnp.pad(v, (0, Hp - H))

    wx = jnp.concatenate([pad_x(params["W_ix"]), pad_x(params["W_fx"]),
                          pad_x(params["W_ox"]), pad_x(params["W_gx"])], axis=1)
    wh = jnp.concatenate([pad_h(params["W_ih"]), pad_h(params["W_fh"]),
                          pad_h(params["W_oh"]), pad_h(params["W_gh"])], axis=1)
    bias = jnp.concatenate([pad_b(params["b_i"]), pad_b(params["b_f"]),
                            pad_b(params["b_o"]), pad_b(params["b_g"])])

    # --- Hoisted input projection + bias fold: one large MXU-friendly matmul.
    xg = jnp.dot(embeds.reshape(T * B, E).astype(matmul_dtype),
                 wx.astype(matmul_dtype),
                 preferred_element_type=jnp.float32)
    xg = (xg + bias[None, :]).reshape(T, B, 4 * Hp)

    # --- Pad batch / time so every kernel block is (8, 128)-aligned.
    Tc = max(1, min(time_block, T))
    Tp = _round_up(T, Tc)
    Bb = _round_up(B, 8) if batch_block is None else _round_up(batch_block, 8)
    Bp = _round_up(_round_up(B, 8), Bb)
    xg = jnp.pad(xg, ((0, Tp - T), (0, Bp - B), (0, 0)))

    # --- Initial states (zeros by default), padded to (Bp, Hp).
    if h0 is None:
        h0p = jnp.zeros((Bp, Hp), jnp.float32)
    else:
        h0p = jnp.pad(h0.astype(jnp.float32), ((0, Bp - B), (0, Hp - H)))
    if c0 is None:
        c0p = jnp.zeros((Bp, Hp), jnp.float32)
    else:
        c0p = jnp.pad(c0.astype(jnp.float32), ((0, Bp - B), (0, Hp - H)))

    wh = wh.astype(matmul_dtype)
    n_b = Bp // Bb
    n_t = Tp // Tc

    # --- Explicit VMEM budget (double-buffered xg/out/state blocks,
    #     single-buffered weights, f32 h/c scratch) with headroom, clamped for
    #     v7x's 64 MiB.
    w_itemsize = jnp.dtype(matmul_dtype).itemsize
    vmem_need = (
        2 * Tc * Bb * 4 * Hp * 4          # xg blocks (double-buffered)
        + 2 * Tc * Bb * Hp * 4            # out blocks
        + 4 * Bb * Hp * 4                 # h0/c0 blocks
        + Hp * 4 * Hp * w_itemsize        # Wh scratch (single-buffered)
        + 2 * Bb * Hp * 4                 # h/c scratch
    )
    vmem_limit = int(min(64 * 1024 * 1024,
                         max(2 * vmem_need, 32 * 1024 * 1024)))

    out_p = pl.pallas_call(
        _lstm_kernel,
        out_shape=jax.ShapeDtypeStruct((Tp, Bp, Hp), embeds.dtype),
        grid_spec=pltpu.PrefetchScalarGridSpec(
            num_scalar_prefetch=0,
            grid=(n_b, n_t),
            in_specs=[
                pl.BlockSpec((Tc, Bb, 4 * Hp), lambda b, t: (t, b, 0)),
                pl.BlockSpec((Bb, Hp), lambda b, t: (b, 0)),       # h0
                pl.BlockSpec((Bb, Hp), lambda b, t: (b, 0)),       # c0
                pl.BlockSpec(memory_space=pl.ANY),  # Wh stays in HBM; copied once
            ],
            out_specs=pl.BlockSpec((Tc, Bb, Hp), lambda b, t: (t, b, 0)),
            scratch_shapes=[
                pltpu.VMEM((Hp, 4 * Hp), matmul_dtype),  # Wh (single-buffered)
                pltpu.VMEM((Bb, Hp), jnp.float32),       # h_t
                pltpu.VMEM((Bb, Hp), jnp.float32),       # c_t
                pltpu.SemaphoreType.DMA(()),
            ],
        ),
        compiler_params=pltpu.CompilerParams(
            dimension_semantics=("parallel", "arbitrary"),
            vmem_limit_bytes=vmem_limit,
        ),
    )(xg, h0p, c0p, wh)

    return out_p[:T, :B, :H]


def _reference_lstm(embeds, params, h0=None, c0=None):
    """Pure-JAX reference replicating the PyTorch forward loop exactly."""
    T, B, E = embeds.shape
    H = params["W_ih"].shape[0]
    h = jnp.zeros((B, H), jnp.float32) if h0 is None else h0
    c = jnp.zeros((B, H), jnp.float32) if c0 is None else c0
    outs = []
    for t in range(T):
        x_t = embeds[t]
        i_t = jax.nn.sigmoid(x_t @ params["W_ix"] + h @ params["W_ih"] + params["b_i"])
        f_t = jax.nn.sigmoid(x_t @ params["W_fx"] + h @ params["W_fh"] + params["b_f"])
        o_t = jax.nn.sigmoid(x_t @ params["W_ox"] + h @ params["W_oh"] + params["b_o"])
        g_t = jnp.tanh(x_t @ params["W_gx"] + h @ params["W_gh"] + params["b_g"])
        c = g_t * i_t + c * f_t
        h = jnp.tanh(c) * o_t
        outs.append(h)
    return jnp.stack(outs, axis=0)


if __name__ == "__main__":
    # Small shapes consistent with the module's forward: [T, B, E] input.
    T, B, E, H = 8, 8, 32, 32
    sigma = 1.0 / math.sqrt(H)

    key = jax.random.PRNGKey(0)
    keys = jax.random.split(key, 15)

    def u(k, shape):
        return jax.random.uniform(k, shape, jnp.float32, -sigma, sigma)

    # Deterministic uniform(-sigma, sigma) init, matching init_parameters().
    # (The docstring mentions +1 on the forget bias but the code never adds it,
    #  so we reproduce the code as written.)
    params = {
        "W_ix": u(keys[0], (E, H)), "W_fx": u(keys[1], (E, H)),
        "W_ox": u(keys[2], (E, H)), "W_gx": u(keys[3], (E, H)),
        "W_ih": u(keys[4], (H, H)), "W_fh": u(keys[5], (H, H)),
        "W_oh": u(keys[6], (H, H)), "W_gh": u(keys[7], (H, H)),
        "b_i": u(keys[8], (H,)), "b_f": u(keys[9], (H,)),
        "b_o": u(keys[10], (H,)), "b_g": u(keys[11], (H,)),
    }
    embeds = jax.random.normal(keys[12], (T, B, E), jnp.float32)

    # Default (zero-state) path, matching forward(embeds).
    out = lstm_forward(embeds, params)
    out = jax.block_until_ready(out)
    assert out.shape == (T, B, H)
    ref = _reference_lstm(embeds, params)
    assert jnp.allclose(out, ref, atol=1e-4, rtol=1e-4), \
        float(jnp.max(jnp.abs(out - ref)))

    # Provided-states path, matching forward(embeds, states=(h0, c0)).
    h0 = jax.random.normal(keys[13], (B, H), jnp.float32) * 0.1
    c0 = jax.random.normal(keys[14], (B, H), jnp.float32) * 0.1
    out_s = jax.block_until_ready(lstm_forward(embeds, params, h0, c0))
    ref_s = _reference_lstm(embeds, params, h0, c0)
    assert jnp.allclose(out_s, ref_s, atol=1e-4, rtol=1e-4), \
        float(jnp.max(jnp.abs(out_s - ref_s)))

    print("KERNEL_OK")
</pallas_src>

<mosaic_0001>
module attributes {stable_mosaic.version = 11 : i64} {
  func.func @_lstm_kernel(%arg0: i32, %arg1: i32, %arg2: memref<8x8x512xf32, #tpu.memory_space<vmem>>, %arg3: memref<8x128xf32, #tpu.memory_space<vmem>>, %arg4: memref<8x128xf32, #tpu.memory_space<vmem>>, %arg5: memref<128x512xf32, #tpu.memory_space<any>>, %arg6: memref<8x8x128xf32, #tpu.memory_space<vmem>>, %arg7: memref<128x512xf32, #tpu.memory_space<vmem>>, %arg8: memref<8x128xf32, #tpu.memory_space<vmem>>, %arg9: memref<8x128xf32, #tpu.memory_space<vmem>>, %arg10: memref<!tpu.dma_semaphore, #tpu.memory_space<semaphore_mem>>) attributes {dimension_semantics = [#tpu.dimension_semantics<parallel>, #tpu.dimension_semantics<arbitrary>], iteration_bounds = array<i64: 1, 1>, scalar_prefetch = 0 : i64, scratch_operands = 4 : i64, tpu.core_type = #tpu.core_type<tc>, window_params = [{transform_indices = @transform_0, window_bounds = array<i64: 8, 8, 512>}, {transform_indices = @transform_1, window_bounds = array<i64: 8, 128>}, {transform_indices = @transform_2, window_bounds = array<i64: 8, 128>}, {}, {transform_indices = @transform_4, window_bounds = array<i64: 8, 8, 128>}]} {
    %c0_i32 = arith.constant 0 : i32
    %0 = arith.cmpi eq, %arg1, %c0_i32 : i32
    %1 = arith.extui %0 : i1 to i32
    %c0_i32_0 = arith.constant 0 : i32
    %2 = arith.cmpi ne, %1, %c0_i32_0 : i32
    scf.if %2 {
      tpu.enqueue_dma source(%arg5 : memref<128x512xf32, #tpu.memory_space<any>>) target(%arg7 : memref<128x512xf32, #tpu.memory_space<vmem>>) target_semaphore(%arg10 : memref<!tpu.dma_semaphore, #tpu.memory_space<semaphore_mem>>)
      %c0_58 = arith.constant 0 : index
      %c0_59 = arith.constant 0 : index
      %208 = vector.load %arg3[%c0_58, %c0_59] : memref<8x128xf32, #tpu.memory_space<vmem>>, vector<8x128xf32>
      %c0_60 = arith.constant 0 : index
      %c0_61 = arith.constant 0 : index
      %209 = vector.load %arg8[%c0_60, %c0_61] : memref<8x128xf32, #tpu.memory_space<vmem>>, vector<8x128xf32>
      tpu.vector_store %arg8[%c0_60, %c0_61], %208 {strides = array<i32>} : memref<8x128xf32, #tpu.memory_space<vmem>>, vector<8x128xf32>,
      %c0_62 = arith.constant 0 : index
      %c0_63 = arith.constant 0 : index
      %210 = vector.load %arg4[%c0_62, %c0_63] : memref<8x128xf32, #tpu.memory_space<vmem>>, vector<8x128xf32>
      %c0_64 = arith.constant 0 : index
      %c0_65 = arith.constant 0 : index
      %211 = vector.load %arg9[%c0_64, %c0_65] : memref<8x128xf32, #tpu.memory_space<vmem>>, vector<8x128xf32>
      tpu.vector_store %arg9[%c0_64, %c0_65], %210 {strides = array<i32>} : memref<8x128xf32, #tpu.memory_space<vmem>>, vector<8x128xf32>,
      tpu.wait_dma2 semaphore(%arg10 : memref<!tpu.dma_semaphore, #tpu.memory_space<semaphore_mem>>) src(%arg5 : memref<128x512xf32, #tpu.memory_space<any>>) dst(%arg7 : memref<128x512xf32, #tpu.memory_space<vmem>>)
    } else {
    }
    %c0 = arith.constant 0 : index
    %c0_1 = arith.constant 0 : index
    %3 = vector.load %arg7[%c0, %c0_1] : memref<128x512xf32, #tpu.memory_space<vmem>>, vector<128x512xf32>
    %c0_2 = arith.constant 0 : index
    %c0_3 = arith.constant 0 : index
    %4 = vector.load %arg8[%c0_2, %c0_3] : memref<8x128xf32, #tpu.memory_space<vmem>>, vector<8x128xf32>
    %c0_4 = arith.constant 0 : index
    %c0_5 = arith.constant 0 : index
    %5 = vector.load %arg9[%c0_4, %c0_5] : memref<8x128xf32, #tpu.memory_space<vmem>>, vector<8x128xf32>
    %c0_i32_6 = arith.constant 0 : i32
    %6 = arith.index_cast %c0_i32_6 : i32 to index
    %c0_7 = arith.constant 0 : index
    %c0_8 = arith.constant 0 : index
    %7 = vector.load %arg2[%6, %c0_7, %c0_8] : memref<8x8x512xf32, #tpu.memory_space<vmem>>, vector<1x8x512xf32>
    %8 = vector.shape_cast %7 : vector<1x8x512xf32> to vector<8x512xf32>
    %cst = arith.constant dense<0.000000e+00> : vector<8x512xf32>
    %9 = tpu.matmul %4, %3, %cst {dimension_numbers = #tpu.dot_dimension_numbers<[1], [0], [0], [1], [0, 0, 1, 1], [], []>} : vector<8x128xf32>, vector<128x512xf32>, vector<8x512xf32> -> vector<8x512xf32>
    %10 = arith.addf %8, %9 : vector<8x512xf32>
    %11 = vector.extract_strided_slice %10 {offsets = [0, 0], sizes = [8, 384], strides = [1, 1]} : vector<8x512xf32> to vector<8x384xf32>
    %12 = arith.negf %11 : vector<8x384xf32>
    %13 = math.exp %12 : vector<8x384xf32>
    %cst_9 = arith.constant 1.000000e+00 : f32
    %14 = vector.broadcast %cst_9 : f32 to vector<8x384xf32>
    %15 = arith.addf %14, %13 : vector<8x384xf32>
    %16 = arith.divf %14, %15 : vector<8x384xf32>
    %17 = vector.extract_strided_slice %10 {offsets = [0, 384], sizes = [8, 128], strides = [1, 1]} : vector<8x512xf32> to vector<8x128xf32>
    %18 = math.tanh %17 : vector<8x128xf32>
    %19 = vector.extract_strided_slice %16 {offsets = [0, 0], sizes = [8, 128], strides = [1, 1]} : vector<8x384xf32> to vector<8x128xf32>
    %20 = vector.extract_strided_slice %16 {offsets = [0, 128], sizes = [8, 128], strides = [1, 1]} : vector<8x384xf32> to vector<8x128xf32>
    %21 = vector.extract_strided_slice %16 {offsets = [0, 256], sizes = [8, 128], strides = [1, 1]} : vector<8x384xf32> to vector<8x128xf32>
    %22 = arith.mulf %18, %19 : vector<8x128xf32>
    %23 = arith.mulf %5, %20 : vector<8x128xf32>
    %24 = arith.addf %22, %23 : vector<8x128xf32>
    %25 = math.tanh %24 : vector<8x128xf32>
    %26 = arith.mulf %25, %21 : vector<8x128xf32>
    %27 = arith.index_cast %c0_i32_6 : i32 to index
    %c0_10 = arith.constant 0 : index
    %c0_11 = arith.constant 0 : index
    %28 = vector.load %arg6[%27, %c0_10, %c0_11] : memref<8x8x128xf32, #tpu.memory_space<vmem>>, vector<1x8x128xf32>
    %29 = vector.shape_cast %28 : vector<1x8x128xf32> to vector<8x128xf32>
    %30 = vector.shape_cast %26 : vector<8x128xf32> to vector<1x8x128xf32>
    tpu.vector_store %arg6[%27, %c0_10, %c0_11], %30 {strides = array<i32>} : memref<8x8x128xf32, #tpu.memory_space<vmem>>, vector<1x8x128xf32>,
    %c1_i32 = arith.constant 1 : i32
    %31 = arith.index_cast %c1_i32 : i32 to index
    %c0_12 = arith.constant 0 : index
    %c0_13 = arith.constant 0 : index
    %32 = vector.load %arg2[%31, %c0_12, %c0_13] : memref<8x8x512xf32, #tpu.memory_space<vmem>>, vector<1x8x512xf32>
    %33 = vector.shape_cast %32 : vector<1x8x512xf32> to vector<8x512xf32>
    %cst_14 = arith.constant dense<0.000000e+00> : vector<8x512xf32>
    %34 = tpu.matmul %26, %3, %cst_14 {dimension_numbers = #tpu.dot_dimension_numbers<[1], [0], [0], [1], [0, 0, 1, 1], [], []>} : vector<8x128xf32>, vector<128x512xf32>, vector<8x512xf32> -> vector<8x512xf32>
    %35 = arith.addf %33, %34 : vector<8x512xf32>
    %36 = vector.extract_strided_slice %35 {offsets = [0, 0], sizes = [8, 384], strides = [1, 1]} : vector<8x512xf32> to vector<8x384xf32>
    %37 = arith.negf %36 : vector<8x384xf32>
    %38 = math.exp %37 : vector<8x384xf32>
    %cst_15 = arith.constant 1.000000e+00 : f32
    %39 = vector.broadcast %cst_15 : f32 to vector<8x384xf32>
    %40 = arith.addf %39, %38 : vector<8x384xf32>
    %41 = arith.divf %39, %40 : vector<8x384xf32>
    %42 = vector.extract_strided_slice %35 {offsets = [0, 384], sizes = [8, 128], strides = [1, 1]} : vector<8x512xf32> to vector<8x128xf32>
    %43 = math.tanh %42 : vector<8x128xf32>
    %44 = vector.extract_strided_slice %41 {offsets = [0, 0], sizes = [8, 128], strides = [1, 1]} : vector<8x384xf32> to vector<8x128xf32>
    %45 = vector.extract_strided_slice %41 {offsets = [0, 128], sizes = [8, 128], strides = [1, 1]} : vector<8x384xf32> to vector<8x128xf32>
    %46 = vector.extract_strided_slice %41 {offsets = [0, 256], sizes = [8, 128], strides = [1, 1]} : vector<8x384xf32> to vector<8x128xf32>
    %47 = arith.mulf %43, %44 : vector<8x128xf32>
    %48 = arith.mulf %24, %45 : vector<8x128xf32>
    %49 = arith.addf %47, %48 : vector<8x128xf32>
    %50 = math.tanh %49 : vector<8x128xf32>
    %51 = arith.mulf %50, %46 : vector<8x128xf32>
    %52 = arith.index_cast %c1_i32 : i32 to index
    %c0_16 = arith.constant 0 : index
    %c0_17 = arith.constant 0 : index
    %53 = vector.load %arg6[%52, %c0_16, %c0_17] : memref<8x8x128xf32, #tpu.memory_space<vmem>>, vector<1x8x128xf32>
    %54 = vector.shape_cast %53 : vector<1x8x128xf32> to vector<8x128xf32>
    %55 = vector.shape_cast %51 : vector<8x128xf32> to vector<1x8x128xf32>
    tpu.vector_store %arg6[%52, %c0_16, %c0_17], %55 {strides = array<i32>} : memref<8x8x128xf32, #tpu.memory_space<vmem>>, vector<1x8x128xf32>,
    %c2_i32 = arith.constant 2 : i32
    %56 = arith.index_cast %c2_i32 : i32 to index
    %c0_18 = arith.constant 0 : index
    %c0_19 = arith.constant 0 : index
    %57 = vector.load %arg2[%56, %c0_18, %c0_19] : memref<8x8x512xf32, #tpu.memory_space<vmem>>, vector<1x8x512xf32>
    %58 = vector.shape_cast %57 : vector<1x8x512xf32> to vector<8x512xf32>
    %cst_20 = arith.constant dense<0.000000e+00> : vector<8x512xf32>
    %59 = tpu.matmul %51, %3, %cst_20 {dimension_numbers = #tpu.dot_dimension_numbers<[1], [0], [0], [1], [0, 0, 1, 1], [], []>} : vector<8x128xf32>, vector<128x512xf32>, vector<8x512xf32> -> vector<8x512xf32>
    %60 = arith.addf %58, %59 : vector<8x512xf32>
    %61 = vector.extract_strided_slice %60 {offsets = [0, 0], sizes = [8, 384], strides = [1, 1]} : vector<8x512xf32> to vector<8x384xf32>
    %62 = arith.negf %61 : vector<8x384xf32>
    %63 = math.exp %62 : vector<8x384xf32>
    %cst_21 = arith.constant 1.000000e+00 : f32
    %64 = vector.broadcast %cst_21 : f32 to vector<8x384xf32>
    %65 = arith.addf %64, %63 : vector<8x384xf32>
    %66 = arith.divf %64, %65 : vector<8x384xf32>
    %67 = vector.extract_strided_slice %60 {offsets = [0, 384], sizes = [8, 128], strides = [1, 1]} : vector<8x512xf32> to vector<8x128xf32>
    %68 = math.tanh %67 : vector<8x128xf32>
    %69 = vector.extract_strided_slice %66 {offsets = [0, 0], sizes = [8, 128], strides = [1, 1]} : vector<8x384xf32> to vector<8x128xf32>
    %70 = vector.extract_strided_slice %66 {offsets = [0, 128], sizes = [8, 128], strides = [1, 1]} : vector<8x384xf32> to vector<8x128xf32>
    %71 = vector.extract_strided_slice %66 {offsets = [0, 256], sizes = [8, 128], strides = [1, 1]} : vector<8x384xf32> to vector<8x128xf32>
    %72 = arith.mulf %68, %69 : vector<8x128xf32>
    %73 = arith.mulf %49, %70 : vector<8x128xf32>
    %74 = arith.addf %72, %73 : vector<8x128xf32>
    %75 = math.tanh %74 : vector<8x128xf32>
    %76 = arith.mulf %75, %71 : vector<8x128xf32>
    %77 = arith.index_cast %c2_i32 : i32 to index
    %c0_22 = arith.constant 0 : index
    %c0_23 = arith.constant 0 : index
    %78 = vector.load %arg6[%77, %c0_22, %c0_23] : memref<8x8x128xf32, #tpu.memory_space<vmem>>, vector<1x8x128xf32>
    %79 = vector.shape_cast %78 : vector<1x8x128xf32> to vector<8x128xf32>
    %80 = vector.shape_cast %76 : vector<8x128xf32> to vector<1x8x128xf32>
    tpu.vector_store %arg6[%77, %c0_22, %c0_23], %80 {strides = array<i32>} : memref<8x8x128xf32, #tpu.memory_space<vmem>>, vector<1x8x128xf32>,
    %c3_i32 = arith.constant 3 : i32
    %81 = arith.index_cast %c3_i32 : i32 to index
    %c0_24 = arith.constant 0 : index
    %c0_25 = arith.constant 0 : index
    %82 = vector.load %arg2[%81, %c0_24, %c0_25] : memref<8x8x512xf32, #tpu.memory_space<vmem>>, vector<1x8x512xf32>
    %83 = vector.shape_cast %82 : vector<1x8x512xf32> to vector<8x512xf32>
    %cst_26 = arith.constant dense<0.000000e+00> : vector<8x512xf32>
    %84 = tpu.matmul %76, %3, %cst_26 {dimension_numbers = #tpu.dot_dimension_numbers<[1], [0], [0], [1], [0, 0, 1, 1], [], []>} : vector<8x128xf32>, vector<128x512xf32>, vector<8x512xf32> -> vector<8x512xf32>
    %85 = arith.addf %83, %84 : vector<8x512xf32>
    %86 = vector.extract_strided_slice %85 {offsets = [0, 0], sizes = [8, 384], strides = [1, 1]} : vector<8x512xf32> to vector<8x384xf32>
    %87 = arith.negf %86 : vector<8x384xf32>
    %88 = math.exp %87 : vector<8x384xf32>
    %cst_27 = arith.constant 1.000000e+00 : f32
    %89 = vector.broadcast %cst_27 : f32 to vector<8x384xf32>
    %90 = arith.addf %89, %88 : vector<8x384xf32>
    %91 = arith.divf %89, %90 : vector<8x384xf32>
    %92 = vector.extract_strided_slice %85 {offsets = [0, 384], sizes = [8, 128], strides = [1, 1]} : vector<8x512xf32> to vector<8x128xf32>
    %93 = math.tanh %92 : vector<8x128xf32>
    %94 = vector.extract_strided_slice %91 {offsets = [0, 0], sizes = [8, 128], strides = [1, 1]} : vector<8x384xf32> to vector<8x128xf32>
    %95 = vector.extract_strided_slice %91 {offsets = [0, 128], sizes = [8, 128], strides = [1, 1]} : vector<8x384xf32> to vector<8x128xf32>
    %96 = vector.extract_strided_slice %91 {offsets = [0, 256], sizes = [8, 128], strides = [1, 1]} : vector<8x384xf32> to vector<8x128xf32>
    %97 = arith.mulf %93, %94 : vector<8x128xf32>
    %98 = arith.mulf %74, %95 : vector<8x128xf32>
    %99 = arith.addf %97, %98 : vector<8x128xf32>
    %100 = math.tanh %99 : vector<8x128xf32>
    %101 = arith.mulf %100, %96 : vector<8x128xf32>
    %102 = arith.index_cast %c3_i32 : i32 to index
    %c0_28 = arith.constant 0 : index
    %c0_29 = arith.constant 0 : index
    %103 = vector.load %arg6[%102, %c0_28, %c0_29] : memref<8x8x128xf32, #tpu.memory_space<vmem>>, vector<1x8x128xf32>
    %104 = vector.shape_cast %103 : vector<1x8x128xf32> to vector<8x128xf32>
    %105 = vector.shape_cast %101 : vector<8x128xf32> to vector<1x8x128xf32>
    tpu.vector_store %arg6[%102, %c0_28, %c0_29], %105 {strides = array<i32>} : memref<8x8x128xf32, #tpu.memory_space<vmem>>, vector<1x8x128xf32>,
    %c4_i32 = arith.constant 4 : i32
    %106 = arith.index_cast %c4_i32 : i32 to index
    %c0_30 = arith.constant 0 : index
    %c0_31 = arith.constant 0 : index
    %107 = vector.load %arg2[%106, %c0_30, %c0_31] : memref<8x8x512xf32, #tpu.memory_space<vmem>>, vector<1x8x512xf32>
    %108 = vector.shape_cast %107 : vector<1x8x512xf32> to vector<8x512xf32>
    %cst_32 = arith.constant dense<0.000000e+00> : vector<8x512xf32>
    %109 = tpu.matmul %101, %3, %cst_32 {dimension_numbers = #tpu.dot_dimension_numbers<[1], [0], [0], [1], [0, 0, 1, 1], [], []>} : vector<8x128xf32>, vector<128x512xf32>, vector<8x512xf32> -> vector<8x512xf32>
    %110 = arith.addf %108, %109 : vector<8x512xf32>
    %111 = vector.extract_strided_slice %110 {offsets = [0, 0], sizes = [8, 384], strides = [1, 1]} : vector<8x512xf32> to vector<8x384xf32>
    %112 = arith.negf %111 : vector<8x384xf32>
    %113 = math.exp %112 : vector<8x384xf32>
    %cst_33 = arith.constant 1.000000e+00 : f32
    %114 = vector.broadcast %cst_33 : f32 to vector<8x384xf32>
    %115 = arith.addf %114, %113 : vector<8x384xf32>
    %116 = arith.divf %114, %115 : vector<8x384xf32>
    %117 = vector.extract_strided_slice %110 {offsets = [0, 384], sizes = [8, 128], strides = [1, 1]} : vector<8x512xf32> to vector<8x128xf32>
    %118 = math.tanh %117 : vector<8x128xf32>
    %119 = vector.extract_strided_slice %116 {offsets = [0, 0], sizes = [8, 128], strides = [1, 1]} : vector<8x384xf32> to vector<8x128xf32>
    %120 = vector.extract_strided_slice %116 {offsets = [0, 128], sizes = [8, 128], strides = [1, 1]} : vector<8x384xf32> to vector<8x128xf32>
    %121 = vector.extract_strided_slice %116 {offsets = [0, 256], sizes = [8, 128], strides = [1, 1]} : vector<8x384xf32> to vector<8x128xf32>
    %122 = arith.mulf %118, %119 : vector<8x128xf32>
    %123 = arith.mulf %99, %120 : vector<8x128xf32>
    %124 = arith.addf %122, %123 : vector<8x128xf32>
    %125 = math.tanh %124 : vector<8x128xf32>
    %126 = arith.mulf %125, %121 : vector<8x128xf32>
    %127 = arith.index_cast %c4_i32 : i32 to index
    %c0_34 = arith.constant 0 : index
    %c0_35 = arith.constant 0 : index
    %128 = vector.load %arg6[%127, %c0_34, %c0_35] : memref<8x8x128xf32, #tpu.memory_space<vmem>>, vector<1x8x128xf32>
    %129 = vector.shape_cast %128 : vector<1x8x128xf32> to vector<8x128xf32>
    %130 = vector.shape_cast %126 : vector<8x128xf32> to vector<1x8x128xf32>
    tpu.vector_store %arg6[%127, %c0_34, %c0_35], %130 {strides = array<i32>} : memref<8x8x128xf32, #tpu.memory_space<vmem>>, vector<1x8x128xf32>,
    %c5_i32 = arith.constant 5 : i32
    %131 = arith.index_cast %c5_i32 : i32 to index
    %c0_36 = arith.constant 0 : index
    %c0_37 = arith.constant 0 : index
    %132 = vector.load %arg2[%131, %c0_36, %c0_37] : memref<8x8x512xf32, #tpu.memory_space<vmem>>, vector<1x8x512xf32>
    %133 = vector.shape_cast %132 : vector<1x8x512xf32> to vector<8x512xf32>
    %cst_38 = arith.constant dense<0.000000e+00> : vector<8x512xf32>
    %134 = tpu.matmul %126, %3, %cst_38 {dimension_numbers = #tpu.dot_dimension_numbers<[1], [0], [0], [1], [0, 0, 1, 1], [], []>} : vector<8x128xf32>, vector<128x512xf32>, vector<8x512xf32> -> vector<8x512xf32>
    %135 = arith.addf %133, %134 : vector<8x512xf32>
    %136 = vector.extract_strided_slice %135 {offsets = [0, 0], sizes = [8, 384], strides = [1, 1]} : vector<8x512xf32> to vector<8x384xf32>
    %137 = arith.negf %136 : vector<8x384xf32>
    %138 = math.exp %137 : vector<8x384xf32>
    %cst_39 = arith.constant 1.000000e+00 : f32
    %139 = vector.broadcast %cst_39 : f32 to vector<8x384xf32>
    %140 = arith.addf %139, %138 : vector<8x384xf32>
    %141 = arith.divf %139, %140 : vector<8x384xf32>
    %142 = vector.extract_strided_slice %135 {offsets = [0, 384], sizes = [8, 128], strides = [1, 1]} : vector<8x512xf32> to vector<8x128xf32>
    %143 = math.tanh %142 : vector<8x128xf32>
    %144 = vector.extract_strided_slice %141 {offsets = [0, 0], sizes = [8, 128], strides = [1, 1]} : vector<8x384xf32> to vector<8x128xf32>
    %145 = vector.extract_strided_slice %141 {offsets = [0, 128], sizes = [8, 128], strides = [1, 1]} : vector<8x384xf32> to vector<8x128xf32>
    %146 = vector.extract_strided_slice %141 {offsets = [0, 256], sizes = [8, 128], strides = [1, 1]} : vector<8x384xf32> to vector<8x128xf32>
    %147 = arith.mulf %143, %144 : vector<8x128xf32>
    %148 = arith.mulf %124, %145 : vector<8x128xf32>
    %149 = arith.addf %147, %148 : vector<8x128xf32>
    %150 = math.tanh %149 : vector<8x128xf32>
    %151 = arith.mulf %150, %146 : vector<8x128xf32>
    %152 = arith.index_cast %c5_i32 : i32 to index
    %c0_40 = arith.constant 0 : index
    %c0_41 = arith.constant 0 : index
    %153 = vector.load %arg6[%152, %c0_40, %c0_41] : memref<8x8x128xf32, #tpu.memory_space<vmem>>, vector<1x8x128xf32>
    %154 = vector.shape_cast %153 : vector<1x8x128xf32> to vector<8x128xf32>
    %155 = vector.shape_cast %151 : vector<8x128xf32> to vector<1x8x128xf32>
    tpu.vector_store %arg6[%152, %c0_40, %c0_41], %155 {strides = array<i32>} : memref<8x8x128xf32, #tpu.memory_space<vmem>>, vector<1x8x128xf32>,
    %c6_i32 = arith.constant 6 : i32
    %156 = arith.index_cast %c6_i32 : i32 to index
    %c0_42 = arith.constant 0 : index
    %c0_43 = arith.constant 0 : index
    %157 = vector.load %arg2[%156, %c0_42, %c0_43] : memref<8x8x512xf32, #tpu.memory_space<vmem>>, vector<1x8x512xf32>
    %158 = vector.shape_cast %157 : vector<1x8x512xf32> to vector<8x512xf32>
    %cst_44 = arith.constant dense<0.000000e+00> : vector<8x512xf32>
    %159 = tpu.matmul %151, %3, %cst_44 {dimension_numbers = #tpu.dot_dimension_numbers<[1], [0], [0], [1], [0, 0, 1, 1], [], []>} : vector<8x128xf32>, vector<128x512xf32>, vector<8x512xf32> -> vector<8x512xf32>
    %160 = arith.addf %158, %159 : vector<8x512xf32>
    %161 = vector.extract_strided_slice %160 {offsets = [0, 0], sizes = [8, 384], strides = [1, 1]} : vector<8x512xf32> to vector<8x384xf32>
    %162 = arith.negf %161 : vector<8x384xf32>
    %163 = math.exp %162 : vector<8x384xf32>
    %cst_45 = arith.constant 1.000000e+00 : f32
    %164 = vector.broadcast %cst_45 : f32 to vector<8x384xf32>
    %165 = arith.addf %164, %163 : vector<8x384xf32>
    %166 = arith.divf %164, %165 : vector<8x384xf32>
    %167 = vector.extract_strided_slice %160 {offsets = [0, 384], sizes = [8, 128], strides = [1, 1]} : vector<8x512xf32> to vector<8x128xf32>
    %168 = math.tanh %167 : vector<8x128xf32>
    %169 = vector.extract_strided_slice %166 {offsets = [0, 0], sizes = [8, 128], strides = [1, 1]} : vector<8x384xf32> to vector<8x128xf32>
    %170 = vector.extract_strided_slice %166 {offsets = [0, 128], sizes = [8, 128], strides = [1, 1]} : vector<8x384xf32> to vector<8x128xf32>
    %171 = vector.extract_strided_slice %166 {offsets = [0, 256], sizes = [8, 128], strides = [1, 1]} : vector<8x384xf32> to vector<8x128xf32>
    %172 = arith.mulf %168, %169 : vector<8x128xf32>
    %173 = arith.mulf %149, %170 : vector<8x128xf32>
    %174 = arith.addf %172, %173 : vector<8x128xf32>
    %175 = math.tanh %174 : vector<8x128xf32>
    %176 = arith.mulf %175, %171 : vector<8x128xf32>
    %177 = arith.index_cast %c6_i32 : i32 to index
    %c0_46 = arith.constant 0 : index
    %c0_47 = arith.constant 0 : index
    %178 = vector.load %arg6[%177, %c0_46, %c0_47] : memref<8x8x128xf32, #tpu.memory_space<vmem>>, vector<1x8x128xf32>
    %179 = vector.shape_cast %178 : vector<1x8x128xf32> to vector<8x128xf32>
    %180 = vector.shape_cast %176 : vector<8x128xf32> to vector<1x8x128xf32>
    tpu.vector_store %arg6[%177, %c0_46, %c0_47], %180 {strides = array<i32>} : memref<8x8x128xf32, #tpu.memory_space<vmem>>, vector<1x8x128xf32>,
    %c7_i32 = arith.constant 7 : i32
    %181 = arith.index_cast %c7_i32 : i32 to index
    %c0_48 = arith.constant 0 : index
    %c0_49 = arith.constant 0 : index
    %182 = vector.load %arg2[%181, %c0_48, %c0_49] : memref<8x8x512xf32, #tpu.memory_space<vmem>>, vector<1x8x512xf32>
    %183 = vector.shape_cast %182 : vector<1x8x512xf32> to vector<8x512xf32>
    %cst_50 = arith.constant dense<0.000000e+00> : vector<8x512xf32>
    %184 = tpu.matmul %176, %3, %cst_50 {dimension_numbers = #tpu.dot_dimension_numbers<[1], [0], [0], [1], [0, 0, 1, 1], [], []>} : vector<8x128xf32>, vector<128x512xf32>, vector<8x512xf32> -> vector<8x512xf32>
    %185 = arith.addf %183, %184 : vector<8x512xf32>
    %186 = vector.extract_strided_slice %185 {offsets = [0, 0], sizes = [8, 384], strides = [1, 1]} : vector<8x512xf32> to vector<8x384xf32>
    %187 = arith.negf %186 : vector<8x384xf32>
    %188 = math.exp %187 : vector<8x384xf32>
    %cst_51 = arith.constant 1.000000e+00 : f32
    %189 = vector.broadcast %cst_51 : f32 to vector<8x384xf32>
    %190 = arith.addf %189, %188 : vector<8x384xf32>
    %191 = arith.divf %189, %190 : vector<8x384xf32>
    %192 = vector.extract_strided_slice %185 {offsets = [0, 384], sizes = [8, 128], strides = [1, 1]} : vector<8x512xf32> to vector<8x128xf32>
    %193 = math.tanh %192 : vector<8x128xf32>
    %194 = vector.extract_strided_slice %191 {offsets = [0, 0], sizes = [8, 128], strides = [1, 1]} : vector<8x384xf32> to vector<8x128xf32>
    %195 = vector.extract_strided_slice %191 {offsets = [0, 128], sizes = [8, 128], strides = [1, 1]} : vector<8x384xf32> to vector<8x128xf32>
    %196 = vector.extract_strided_slice %191 {offsets = [0, 256], sizes = [8, 128], strides = [1, 1]} : vector<8x384xf32> to vector<8x128xf32>
    %197 = arith.mulf %193, %194 : vector<8x128xf32>
    %198 = arith.mulf %174, %195 : vector<8x128xf32>
    %199 = arith.addf %197, %198 : vector<8x128xf32>
    %200 = math.tanh %199 : vector<8x128xf32>
    %201 = arith.mulf %200, %196 : vector<8x128xf32>
    %202 = arith.index_cast %c7_i32 : i32 to index
    %c0_52 = arith.constant 0 : index
    %c0_53 = arith.constant 0 : index
    %203 = vector.load %arg6[%202, %c0_52, %c0_53] : memref<8x8x128xf32, #tpu.memory_space<vmem>>, vector<1x8x128xf32>
    %204 = vector.shape_cast %203 : vector<1x8x128xf32> to vector<8x128xf32>
    %205 = vector.shape_cast %201 : vector<8x128xf32> to vector<1x8x128xf32>
    tpu.vector_store %arg6[%202, %c0_52, %c0_53], %205 {strides = array<i32>} : memref<8x8x128xf32, #tpu.memory_space<vmem>>, vector<1x8x128xf32>,
    %c8_i32 = arith.constant 8 : i32
    %c0_54 = arith.constant 0 : index
    %c0_55 = arith.constant 0 : index
    %206 = vector.load %arg8[%c0_54, %c0_55] : memref<8x128xf32, #tpu.memory_space<vmem>>, vector<8x128xf32>
    tpu.vector_store %arg8[%c0_54, %c0_55], %201 {strides = array<i32>} : memref<8x128xf32, #tpu.memory_space<vmem>>, vector<8x128xf32>,
    %c0_56 = arith.constant 0 : index
    %c0_57 = arith.constant 0 : index
    %207 = vector.load %arg9[%c0_56, %c0_57] : memref<8x128xf32, #tpu.memory_space<vmem>>, vector<8x128xf32>
    tpu.vector_store %arg9[%c0_56, %c0_57], %199 {strides = array<i32>} : memref<8x128xf32, #tpu.memory_space<vmem>>, vector<8x128xf32>,
    return
  }
  func.func @transform_0(%arg0: i32, %arg1: i32) -> (i32, i32, i32) {
    %c0_i32 = arith.constant 0 : i32
    %c0_i32_0 = arith.constant 0 : i32
    return %arg1, %arg0, %c0_i32 : i32, i32, i32
  }
  func.func @transform_1(%arg0: i32, %arg1: i32) -> (i32, i32) {
    %c0_i32 = arith.constant 0 : i32
    %c0_i32_0 = arith.constant 0 : i32
    return %arg0, %c0_i32 : i32, i32
  }
  func.func @transform_2(%arg0: i32, %arg1: i32) -> (i32, i32) {
    %c0_i32 = arith.constant 0 : i32
    %c0_i32_0 = arith.constant 0 : i32
    return %arg0, %c0_i32 : i32, i32
  }
  func.func @transform_4(%arg0: i32, %arg1: i32) -> (i32, i32, i32) {
    %c0_i32 = arith.constant 0 : i32
    %c0_i32_0 = arith.constant 0 : i32
    return %arg1, %arg0, %c0_i32 : i32, i32, i32
  }
}

</mosaic_0001>

<llo_original>
// kernel: lstm_forward.1
$region0: #{lstm_forward.1}
  #allocation0 [shape = 'u32[]', space=smem, size = 0x4, offset = 0x4, fixed_abs, tag = 'smem constant byte address 0x4 - core index']
  #allocation1 [shape = 'u32[144,128]{1,0:T(1,128)}', space=vmem, size = 0x12000, scoped, tag = 'internal scratch']
  #allocation2 [shape = 'f32[128,512]{1,0:T(8,128)}', space=vmem, size = 0x40000, scoped, tag = 'scratch operand']
  #allocation3 [shape = 'f32[8,128]{1,0:T(8,128)}', space=vmem, size = 0x1000, scoped, tag = 'scratch operand']
  #allocation4 [shape = 'f32[8,128]{1,0:T(8,128)}', space=vmem, size = 0x1000, scoped, tag = 'scratch operand']
  #allocation5 [shape = 's32[1]{0}', space=sflag, size = 0x4, scoped, tag = 'scratch operand']
  #allocation8 [shape = 's32[]', space=sflag, size = 0x4, offset = 0, fixed_abs, tag = 'sflag constant byte address 0x0 - dummy sync flag']
  %s0 = inlined_call_operand.vmem [shape: f32[8,8,512], index: 0, kind: input, shape index: {}]
  %s1 = inlined_call_operand.vmem [shape: f32[8,128], index: 1, kind: input, shape index: {}, may-alias: {1,2}]
  %s2 = inlined_call_operand.vmem [shape: f32[8,128], index: 2, kind: input, shape index: {}, may-alias: {1,2}]
  %s3 = inlined_call_operand.vmem [shape: f32[128,512], index: 3, kind: input, shape index: {}]
  %s4 = inlined_call_operand.hbm [shape: f32[8,8,128], index: 4, kind: output, shape index: {}]
  %s5 = sld [smem:[#allocation0]]
  $region60: #{lstm_forward.1} parent=0
    _
  %s7 = ssub.s32 1, %s5
  %s8 = scalar_select 0, %s7, %s5
  $region1: #{lstm_forward.1} parent=0
    #allocation6 [shape = 'u8[32768]{0}', space=vmem, size = 0x8000, scoped, tag = 'output window, operand 0, single buffered']
    #allocation7 [shape = 's32[1]{0}', space=sflag, size = 0x4, scoped, tag = 'scoped memory for lstm_forward.1']
    %9 = vsyncpa [#allocation7], 0
    // Predicated region
    $region2: #{lstm_forward.1} parent=1 // pred_check
      _
    $region3: #{lstm_forward.1} parent=1 // pred_check_branch
      %11 = sbr.rel (0) target = $region5
    $region4: #{lstm_forward.1} parent=1 // pred_region
      _
    $region5: #{lstm_forward.1} parent=1 // pred_fallthru
      _
    // Predicated region
    $region6: #{lstm_forward.1} parent=1 // pred_check
      _
    $region7: #{lstm_forward.1} parent=1 // pred_check_branch
      %13 = sbr.rel (0) target = $region9
    $region8: #{lstm_forward.1} parent=1 // pred_region
      _
    $region9: #{lstm_forward.1} parent=1 // pred_fallthru
      _
    // Predicated region
    $region10: #{lstm_forward.1} parent=1 // pred_check
      _
    $region11: #{lstm_forward.1} parent=1 // pred_check_branch
      %15 = sbr.rel (0) target = $region13
    $region12: #{lstm_forward.1} parent=1 // pred_region
      _
    $region13: #{lstm_forward.1} parent=1 // pred_fallthru
      _
    %p16 = scmp.eq.s32.totalorder 0, 0
    // Predicated region
    $region14: #{lstm_forward.1} parent=1 // pred_check
      %p17 = pneg %p16
    $region15: #{lstm_forward.1} parent=1 // pred_check_branch
      %19 = sbr.rel (%p17) target = $region17
    $region16: #{lstm_forward.1} parent=1 // pred_region
      %p21 = scmp.lt.u32.totalorder 512, 8
      %p22 = pneg %p21
      // Predicated region
      $region18: #{lstm_forward.1} parent=16 // pred_check
        _
      $region19: #{lstm_forward.1} parent=16 // pred_check_branch
        %24 = sbr.rel (%p21) target = $region21
      $region20: #{lstm_forward.1} parent=16 // pred_region
        %s39 = sand.u32 512, 7
        %p40 = scmp.eq.s32.totalorder %s39, 0
        // Predicated region
        $region33: #{lstm_forward.1} parent=20 // pred_check
          %p41 = pneg %p40
        $region34: #{lstm_forward.1} parent=20 // pred_check_branch
          %43 = sbr.rel (%p41) target = $region36
        $region35: #{lstm_forward.1} parent=20 // pred_region
          loop: start=0, step=1, limit=1
          $region37: #{lstm_forward.1} parent=35 // loop_pre_header
            _
          $region38: #{lstm_forward.1} parent=35 // loop_header
            %s45 = sphi 0, %s49
            %p46 = scmp.ge.s32.totalorder %s45, 1
            %s50 = sphi %s3, %s3
            %s51 = sphi [#allocation2], [#allocation2]
          $region39: #{lstm_forward.1} parent=35 // loop_header_branch
            %48 = sbr.rel (%p46) target = $region43
          $region40: #{lstm_forward.1} parent=35 // loop_body
            %v52 = vld [vmem:[%s50] sm:$0xff]
            %53 = vst [vmem:[%s51] sm:$0xff] %v52
            %v54 = vld [vmem:[%s50 + $0x8] sm:$0xff]
            %55 = vst [vmem:[%s51 + $0x8] sm:$0xff] %v54
            %v56 = vld [vmem:[%s50 + $0x10] sm:$0xff]
            %57 = vst [vmem:[%s51 + $0x10] sm:$0xff] %v56
            %v58 = vld [vmem:[%s50 + $0x18] sm:$0xff]
            %59 = vst [vmem:[%s51 + $0x18] sm:$0xff] %v58
            %v60 = vld [vmem:[%s50 + $0x20] sm:$0xff]
            %61 = vst [vmem:[%s51 + $0x20] sm:$0xff] %v60
            %v62 = vld [vmem:[%s50 + $0x28] sm:$0xff]
            %63 = vst [vmem:[%s51 + $0x28] sm:$0xff] %v62
            %v64 = vld [vmem:[%s50 + $0x30] sm:$0xff]
            %65 = vst [vmem:[%s51 + $0x30] sm:$0xff] %v64
            %v66 = vld [vmem:[%s50 + $0x38] sm:$0xff]
            %67 = vst [vmem:[%s51 + $0x38] sm:$0xff] %v66
            %v68 = vld [vmem:[%s50 + $0x40] sm:$0xff]
            %69 = vst [vmem:[%s51 + $0x40] sm:$0xff] %v68
            %v70 = vld [vmem:[%s50 + $0x48] sm:$0xff]
            %71 = vst [vmem:[%s51 + $0x48] sm:$0xff] %v70
            %v72 = vld [vmem:[%s50 + $0x50] sm:$0xff]
            %73 = vst [vmem:[%s51 + $0x50] sm:$0xff] %v72
            %v74 = vld [vmem:[%s50 + $0x58] sm:$0xff]
            %75 = vst [vmem:[%s51 + $0x58] sm:$0xff] %v74
            %v76 = vld [vmem:[%s50 + $0x60] sm:$0xff]
            %77 = vst [vmem:[%s51 + $0x60] sm:$0xff] %v76
            %v78 = vld [vmem:[%s50 + $0x68] sm:$0xff]
            %79 = vst [vmem:[%s51 + $0x68] sm:$0xff] %v78
            %v80 = vld [vmem:[%s50 + $0x70] sm:$0xff]
            %81 = vst [vmem:[%s51 + $0x70] sm:$0xff] %v80
            %v82 = vld [vmem:[%s50 + $0x78] sm:$0xff]
            %83 = vst [vmem:[%s51 + $0x78] sm:$0xff] %v82
            %v84 = vld [vmem:[%s50 + $0x80] sm:$0xff]
            %85 = vst [vmem:[%s51 + $0x80] sm:$0xff] %v84
            %v86 = vld [vmem:[%s50 + $0x88] sm:$0xff]
            %87 = vst [vmem:[%s51 + $0x88] sm:$0xff] %v86
            %v88 = vld [vmem:[%s50 + $0x90] sm:$0xff]
            %89 = vst [vmem:[%s51 + $0x90] sm:$0xff] %v88
            %v90 = vld [vmem:[%s50 + $0x98] sm:$0xff]
            %91 = vst [vmem:[%s51 + $0x98] sm:$0xff] %v90
            %v92 = vld [vmem:[%s50 + $0xa0] sm:$0xff]
            %93 = vst [vmem:[%s51 + $0xa0] sm:$0xff] %v92
            %v94 = vld [vmem:[%s50 + $0xa8] sm:$0xff]
            %95 = vst [vmem:[%s51 + $0xa8] sm:$0xff] %v94
            %v96 = vld [vmem:[%s50 + $0xb0] sm:$0xff]
            %97 = vst [vmem:[%s51 + $0xb0] sm:$0xff] %v96
            %v98 = vld [vmem:[%s50 + $0xb8] sm:$0xff]
            %99 = vst [vmem:[%s51 + $0xb8] sm:$0xff] %v98
            %v100 = vld [vmem:[%s50 + $0xc0] sm:$0xff]
            %101 = vst [vmem:[%s51 + $0xc0] sm:$0xff] %v100
            %v102 = vld [vmem:[%s50 + $0xc8] sm:$0xff]
            %103 = vst [vmem:[%s51 + $0xc8] sm:$0xff] %v102
            %v104 = vld [vmem:[%s50 + $0xd0] sm:$0xff]
            %105 = vst [vmem:[%s51 + $0xd0] sm:$0xff] %v104
            %v106 = vld [vmem:[%s50 + $0xd8] sm:$0xff]
            %107 = vst [vmem:[%s51 + $0xd8] sm:$0xff] %v106
            %v108 = vld [vmem:[%s50 + $0xe0] sm:$0xff]
            %109 = vst [vmem:[%s51 + $0xe0] sm:$0xff] %v108
            %v110 = vld [vmem:[%s50 + $0xe8] sm:$0xff]
            %111 = vst [vmem:[%s51 + $0xe8] sm:$0xff] %v110
            %v112 = vld [vmem:[%s50 + $0xf0] sm:$0xff]
            %113 = vst [vmem:[%s51 + $0xf0] sm:$0xff] %v112
            %v114 = vld [vmem:[%s50 + $0xf8] sm:$0xff]
            %115 = vst [vmem:[%s51 + $0xf8] sm:$0xff] %v114
            %v116 = vld [vmem:[%s50 + $0x100] sm:$0xff]
            %117 = vst [vmem:[%s51 + $0x100] sm:$0xff] %v116
            %v118 = vld [vmem:[%s50 + $0x108] sm:$0xff]
            %119 = vst [vmem:[%s51 + $0x108] sm:$0xff] %v118
            %v120 = vld [vmem:[%s50 + $0x110] sm:$0xff]
            %121 = vst [vmem:[%s51 + $0x110] sm:$0xff] %v120
            %v122 = vld [vmem:[%s50 + $0x118] sm:$0xff]
            %123 = vst [vmem:[%s51 + $0x118] sm:$0xff] %v122
            %v124 = vld [vmem:[%s50 + $0x120] sm:$0xff]
            %125 = vst [vmem:[%s51 + $0x120] sm:$0xff] %v124
            %v126 = vld [vmem:[%s50 + $0x128] sm:$0xff]
            %127 = vst [vmem:[%s51 + $0x128] sm:$0xff] %v126
            %v128 = vld [vmem:[%s50 + $0x130] sm:$0xff]
            %129 = vst [vmem:[%s51 + $0x130] sm:$0xff] %v128
            %v130 = vld [vmem:[%s50 + $0x138] sm:$0xff]
            %131 = vst [vmem:[%s51 + $0x138] sm:$0xff] %v130
            %v132 = vld [vmem:[%s50 + $0x140] sm:$0xff]
            %133 = vst [vmem:[%s51 + $0x140] sm:$0xff] %v132
            %v134 = vld [vmem:[%s50 + $0x148] sm:$0xff]
            %135 = vst [vmem:[%s51 + $0x148] sm:$0xff] %v134
            %v136 = vld [vmem:[%s50 + $0x150] sm:$0xff]
            %137 = vst [vmem:[%s51 + $0x150] sm:$0xff] %v136
            %v138 = vld [vmem:[%s50 + $0x158] sm:$0xff]
            %139 = vst [vmem:[%s51 + $0x158] sm:$0xff] %v138
            %v140 = vld [vmem:[%s50 + $0x160] sm:$0xff]
            %141 = vst [vmem:[%s51 + $0x160] sm:$0xff] %v140
            %v142 = vld [vmem:[%s50 + $0x168] sm:$0xff]
            %143 = vst [vmem:[%s51 + $0x168] sm:$0xff] %v142
            %v144 = vld [vmem:[%s50 + $0x170] sm:$0xff]
            %145 = vst [vmem:[%s51 + $0x170] sm:$0xff] %v144
            %v146 = vld [vmem:[%s50 + $0x178] sm:$0xff]
            %147 = vst [vmem:[%s51 + $0x178] sm:$0xff] %v146
            %v148 = vld [vmem:[%s50 + $0x180] sm:$0xff]
            %149 = vst [vmem:[%s51 + $0x180] sm:$0xff] %v148
            %v150 = vld [vmem:[%s50 + $0x188] sm:$0xff]
            %151 = vst [vmem:[%s51 + $0x188] sm:$0xff] %v150
            %v152 = vld [vmem:[%s50 + $0x190] sm:$0xff]
            %153 = vst [vmem:[%s51 + $0x190] sm:$0xff] %v152
            %v154 = vld [vmem:[%s50 + $0x198] sm:$0xff]
            %155 = vst [vmem:[%s51 + $0x198] sm:$0xff] %v154
            %v156 = vld [vmem:[%s50 + $0x1a0] sm:$0xff]
            %157 = vst [vmem:[%s51 + $0x1a0] sm:$0xff] %v156
            %v158 = vld [vmem:[%s50 + $0x1a8] sm:$0xff]
            %159 = vst [vmem:[%s51 + $0x1a8] sm:$0xff] %v158
            %v160 = vld [vmem:[%s50 + $0x1b0] sm:$0xff]
            %161 = vst [vmem:[%s51 + $0x1b0] sm:$0xff] %v160
            %v162 = vld [vmem:[%s50 + $0x1b8] sm:$0xff]
            %163 = vst [vmem:[%s51 + $0x1b8] sm:$0xff] %v162
            %v164 = vld [vmem:[%s50 + $0x1c0] sm:$0xff]
            %165 = vst [vmem:[%s51 + $0x1c0] sm:$0xff] %v164
            %v166 = vld [vmem:[%s50 + $0x1c8] sm:$0xff]
            %167 = vst [vmem:[%s51 + $0x1c8] sm:$0xff] %v166
            %v168 = vld [vmem:[%s50 + $0x1d0] sm:$0xff]
            %169 = vst [vmem:[%s51 + $0x1d0] sm:$0xff] %v168
            %v170 = vld [vmem:[%s50 + $0x1d8] sm:$0xff]
            %171 = vst [vmem:[%s51 + $0x1d8] sm:$0xff] %v170
            %v172 = vld [vmem:[%s50 + $0x1e0] sm:$0xff]
            %173 = vst [vmem:[%s51 + $0x1e0] sm:$0xff] %v172
            %v174 = vld [vmem:[%s50 + $0x1e8] sm:$0xff]
            %175 = vst [vmem:[%s51 + $0x1e8] sm:$0xff] %v174
            %v176 = vld [vmem:[%s50 + $0x1f0] sm:$0xff]
            %177 = vst [vmem:[%s51 + $0x1f0] sm:$0xff] %v176
            %v178 = vld [vmem:[%s50 + $0x1f8] sm:$0xff]
            %179 = vst [vmem:[%s51 + $0x1f8] sm:$0xff] %v178
          $region41: #{lstm_forward.1} parent=35 // loop_footer
            %s49 = sadd.s32 1, %s45
          $region42: #{lstm_forward.1} parent=35 // loop_footer_branch
            %44 = sbr.rel target = $region38
          $region43: #{lstm_forward.1} parent=35 // loop_exit
            _
        $region36: #{lstm_forward.1} parent=20 // pred_fallthru
          _
        %p180 = pneg %p40
        // Predicated region
        $region44: #{lstm_forward.1} parent=20 // pred_check
          _
        $region45: #{lstm_forward.1} parent=20 // pred_check_branch
          %182 = sbr.rel (%p40) target = $region47
        $region46: #{lstm_forward.1} parent=20 // pred_region
          %s183 = sand.u32 512, 7
        $region47: #{lstm_forward.1} parent=20 // pred_fallthru
          _
      $region21: #{lstm_forward.1} parent=16 // pred_fallthru
        _
      // Predicated region
      $region22: #{lstm_forward.1} parent=16 // pred_check
        %p25 = pneg %p21
      $region23: #{lstm_forward.1} parent=16 // pred_check_branch
        %27 = sbr.rel (%p25) target = $region25
      $region24: #{lstm_forward.1} parent=16 // pred_region
        %s28 = sshllo.u32 0, 512
        loop: start=0, step=1, limit=1
        $region26: #{lstm_forward.1} parent=24 // loop_pre_header
          _
        $region27: #{lstm_forward.1} parent=24 // loop_header
          %s30 = sphi 0, %s34
          %p31 = scmp.ge.s32.totalorder %s30, 1
          %s35 = sphi %s3, %s3
          %s36 = sphi [#allocation2], [#allocation2]
        $region28: #{lstm_forward.1} parent=24 // loop_header_branch
          %33 = sbr.rel (%p31) target = $region32
        $region29: #{lstm_forward.1} parent=24 // loop_body
          %v37 = vld [vmem:[%s35] sm:%s28]
          %38 = vst [vmem:[%s36] sm:%s28] %v37
        $region30: #{lstm_forward.1} parent=24 // loop_footer
          %s34 = sadd.s32 1, %s30
        $region31: #{lstm_forward.1} parent=24 // loop_footer_branch
          %29 = sbr.rel target = $region27
        $region32: #{lstm_forward.1} parent=24 // loop_exit
          _
      $region25: #{lstm_forward.1} parent=16 // pred_fallthru
        _
      // Predicated region
      $region48: #{lstm_forward.1} parent=16 // pred_check
        _
      $region49: #{lstm_forward.1} parent=16 // pred_check_branch
        %186 = sbr.rel (0) target = $region51
      $region50: #{lstm_forward.1} parent=16 // pred_region
        %187 = vsyncadd [#allocation5], 8192
      $region51: #{lstm_forward.1} parent=16 // pred_fallthru
        _
      %v188 = vld [vmem:[%s1] sm:$0xff]
      %189 = vst [vmem:[#allocation3] sm:$0xff] %v188
      %v190 = vld [vmem:[%s2] sm:$0xff]
      %191 = vst [vmem:[#allocation4] sm:$0xff] %v190
      %s192 = smul.u32 8, 16
      %s193 = smul.u32 %s192, 4
      %s194 = sshll.u32 %s193, 4
      %195 = dma.done [#allocation5], %s194
    $region17: #{lstm_forward.1} parent=1 // pred_fallthru
      _
    %v196 = vld [vmem:[#allocation2] sm:$0xff]
    %v197 = vld [vmem:[#allocation2 + $0x8] sm:$0xff]
    %v198 = vld [vmem:[#allocation2 + $0x10] sm:$0xff]
    %v199 = vld [vmem:[#allocation2 + $0x18] sm:$0xff]
    %v200 = vld [vmem:[#allocation2 + $0x20] sm:$0xff]
    %v201 = vld [vmem:[#allocation2 + $0x28] sm:$0xff]
    %v202 = vld [vmem:[#allocation2 + $0x30] sm:$0xff]
    %v203 = vld [vmem:[#allocation2 + $0x38] sm:$0xff]
    %v204 = vld [vmem:[#allocation2 + $0x40] sm:$0xff]
    %v205 = vld [vmem:[#allocation2 + $0x48] sm:$0xff]
    %v206 = vld [vmem:[#allocation2 + $0x50] sm:$0xff]
    %v207 = vld [vmem:[#allocation2 + $0x58] sm:$0xff]
    %v208 = vld [vmem:[#allocation2 + $0x60] sm:$0xff]
    %v209 = vld [vmem:[#allocation2 + $0x68] sm:$0xff]
    %v210 = vld [vmem:[#allocation2 + $0x70] sm:$0xff]
    %v211 = vld [vmem:[#allocation2 + $0x78] sm:$0xff]
    %v212 = vld [vmem:[#allocation2 + $0x80] sm:$0xff]
    %v213 = vld [vmem:[#allocation2 + $0x88] sm:$0xff]
    %v214 = vld [vmem:[#allocation2 + $0x90] sm:$0xff]
    %v215 = vld [vmem:[#allocation2 + $0x98] sm:$0xff]
    %v216 = vld [vmem:[#allocation2 + $0xa0] sm:$0xff]
    %v217 = vld [vmem:[#allocation2 + $0xa8] sm:$0xff]
    %v218 = vld [vmem:[#allocation2 + $0xb0] sm:$0xff]
    %v219 = vld [vmem:[#allocation2 + $0xb8] sm:$0xff]
    %v220 = vld [vmem:[#allocation2 + $0xc0] sm:$0xff]
    %v221 = vld [vmem:[#allocation2 + $0xc8] sm:$0xff]
    %v222 = vld [vmem:[#allocation2 + $0xd0] sm:$0xff]
    %v223 = vld [vmem:[#allocation2 + $0xd8] sm:$0xff]
    %v224 = vld [vmem:[#allocation2 + $0xe0] sm:$0xff]
    %v225 = vld [vmem:[#allocation2 + $0xe8] sm:$0xff]
    %v226 = vld [vmem:[#allocation2 + $0xf0] sm:$0xff]
    %v227 = vld [vmem:[#allocation2 + $0xf8] sm:$0xff]
    %v228 = vld [vmem:[#allocation2 + $0x100] sm:$0xff]
    %v229 = vld [vmem:[#allocation2 + $0x108] sm:$0xff]
    %v230 = vld [vmem:[#allocation2 + $0x110] sm:$0xff]
    %v231 = vld [vmem:[#allocation2 + $0x118] sm:$0xff]
    %v232 = vld [vmem:[#allocation2 + $0x120] sm:$0xff]
    %v233 = vld [vmem:[#allocation2 + $0x128] sm:$0xff]
    %v234 = vld [vmem:[#allocation2 + $0x130] sm:$0xff]
    %v235 = vld [vmem:[#allocation2 + $0x138] sm:$0xff]
    %v236 = vld [vmem:[#allocation2 + $0x140] sm:$0xff]
    %v237 = vld [vmem:[#allocation2 + $0x148] sm:$0xff]
    %v238 = vld [vmem:[#allocation2 + $0x150] sm:$0xff]
    %v239 = vld [vmem:[#allocation2 + $0x158] sm:$0xff]
    %v240 = vld [vmem:[#allocation2 + $0x160] sm:$0xff]
    %v241 = vld [vmem:[#allocation2 + $0x168] sm:$0xff]
    %v242 = vld [vmem:[#allocation2 + $0x170] sm:$0xff]
    %v243 = vld [vmem:[#allocation2 + $0x178] sm:$0xff]
    %v244 = vld [vmem:[#allocation2 + $0x180] sm:$0xff]
    %v245 = vld [vmem:[#allocation2 + $0x188] sm:$0xff]
    %v246 = vld [vmem:[#allocation2 + $0x190] sm:$0xff]
    %v247 = vld [vmem:[#allocation2 + $0x198] sm:$0xff]
    %v248 = vld [vmem:[#allocation2 + $0x1a0] sm:$0xff]
    %v249 = vld [vmem:[#allocation2 + $0x1a8] sm:$0xff]
    %v250 = vld [vmem:[#allocation2 + $0x1b0] sm:$0xff]
    %v251 = vld [vmem:[#allocation2 + $0x1b8] sm:$0xff]
    %v252 = vld [vmem:[#allocation2 + $0x1c0] sm:$0xff]
    %v253 = vld [vmem:[#allocation2 + $0x1c8] sm:$0xff]
    %v254 = vld [vmem:[#allocation2 + $0x1d0] sm:$0xff]
    %v255 = vld [vmem:[#allocation2 + $0x1d8] sm:$0xff]
    %v256 = vld [vmem:[#allocation2 + $0x1e0] sm:$0xff]
    %v257 = vld [vmem:[#allocation2 + $0x1e8] sm:$0xff]
    %v258 = vld [vmem:[#allocation2 + $0x1f0] sm:$0xff]
    %v259 = vld [vmem:[#allocation2 + $0x1f8] sm:$0xff]
    %v260 = vld [vmem:[#allocation3] sm:$0xff]
    %v261 = vld [vmem:[#allocation4] sm:$0xff]
    %v262 = vld [vmem:[%s0] sm:$0xff]
    %v263 = vld [vmem:[%s0 + $0x8] sm:$0xff]
    %v264 = vld [vmem:[%s0 + $0x10] sm:$0xff]
    %v265 = vld [vmem:[%s0 + $0x18] sm:$0xff]
    %266 = vmatprep.subr.mxu0 %v197
    %267 = vmatpush1.msra.mxu0 %v196
    %268 = vmatprep.subr.mxu0 %v201
    %269 = vmatpush1.msra.mxu0 %v200
    %270 = vmatprep.subr.mxu0 %v205
    %271 = vmatpush1.msra.mxu0 %v204
    %272 = vmatprep.subr.mxu0 %v209
    %273 = vmatpush1.msra.mxu0 %v208
    %274 = vmatprep.subr.mxu0 %v213
    %275 = vmatpush1.msra.mxu0 %v212
    %276 = vmatprep.subr.mxu0 %v217
    %277 = vmatpush1.msra.mxu0 %v216
    %278 = vmatprep.subr.mxu0 %v221
    %279 = vmatpush1.msra.mxu0 %v220
    %280 = vmatprep.subr.mxu0 %v225
    %281 = vmatpush1.msra.mxu0 %v224
    %282 = vmatprep.subr.mxu0 %v229
    %283 = vmatpush1.msra.mxu0 %v228
    %284 = vmatprep.subr.mxu0 %v233
    %285 = vmatpush1.msra.mxu0 %v232
    %286 = vmatprep.subr.mxu0 %v237
    %287 = vmatpush1.msra.mxu0 %v236
    %288 = vmatprep.subr.mxu0 %v241
    %289 = vmatpush1.msra.mxu0 %v240
    %290 = vmatprep.subr.mxu0 %v245
    %291 = vmatpush1.msra.mxu0 %v244
    %292 = vmatprep.subr.mxu0 %v249
    %293 = vmatpush1.msra.mxu0 %v248
    %294 = vmatprep.subr.mxu0 %v253
    %295 = vmatpush1.msra.mxu0 %v252
    %296 = vmatprep.subr.mxu0 %v257
    %297 = vmatpush1.msra.mxu0 %v256
    %298 = vmatprep.subr.mxu0 0.0
    %299 = vmatpush1.msra.mxu0 0.0
    %300 = vmatprep.subr.mxu0 0.0
    %301 = vmatpush1.msra.mxu0 0.0
    %302 = vmatprep.subr.mxu0 0.0
    %303 = vmatpush1.msra.mxu0 0.0
    %304 = vmatprep.subr.mxu0 0.0
    %305 = vmatpush1.msra.mxu0 0.0
    %306 = vmatprep.subr.mxu0 0.0
    %307 = vmatpush1.msra.mxu0 0.0
    %308 = vmatprep.subr.mxu0 0.0
    %309 = vmatpush1.msra.mxu0 0.0
    %310 = vmatprep.subr.mxu0 0.0
    %311 = vmatpush1.msra.mxu0 0.0
    %312 = vmatprep.subr.mxu0 0.0
    %313 = vmatpush1.msra.mxu0 0.0
    %314 = vmatprep.subr.mxu0 0.0
    %315 = vmatpush1.msra.mxu0 0.0
    %316 = vmatprep.subr.mxu0 0.0
    %317 = vmatpush1.msra.mxu0 0.0
    %318 = vmatprep.subr.mxu0 0.0
    %319 = vmatpush1.msra.mxu0 0.0
    %320 = vmatprep.subr.mxu0 0.0
    %321 = vmatpush1.msra.mxu0 0.0
    %322 = vmatprep.subr.mxu0 0.0
    %323 = vmatpush1.msra.mxu0 0.0
    %324 = vmatprep.subr.mxu0 0.0
    %325 = vmatpush1.msra.mxu0 0.0
    %326 = vmatprep.subr.mxu0 0.0
    %327 = vmatpush1.msra.mxu0 0.0
    %328 = vmatprep.subr.mxu0 0.0
    %329 = vmatpush1.msra.mxu0 0.0
    %330 = vmatprep.mubr.f32.mxu0 0.0
    %331 = vmatmul.mubr.f32.gmra.mrb[0].mxu0 %v260
    %v332 = vpop.f32.mrb[0].mxu0
    %v333 = vadd.f32 0.0, %v332
    %v334 = vpop.f32.mrb[0].mxu0
    %v335 = vadd.f32 0.0, %v334
    %336 = vdwg.mxu0
    %337 = vmatprep.subr.mxu0 %v199
    %338 = vmatpush1.msra.mxu0 %v198
    %339 = vmatprep.subr.mxu0 %v203
    %340 = vmatpush1.msra.mxu0 %v202
    %341 = vmatprep.subr.mxu0 %v207
    %342 = vmatpush1.msra.mxu0 %v206
    %343 = vmatprep.subr.mxu0 %v211
    %344 = vmatpush1.msra.mxu0 %v210
    %345 = vmatprep.subr.mxu0 %v215
    %346 = vmatpush1.msra.mxu0 %v214
    %347 = vmatprep.subr.mxu0 %v219
    %348 = vmatpush1.msra.mxu0 %v218
    %349 = vmatprep.subr.mxu0 %v223
    %350 = vmatpush1.msra.mxu0 %v222
    %351 = vmatprep.subr.mxu0 %v227
    %352 = vmatpush1.msra.mxu0 %v226
    %353 = vmatprep.subr.mxu0 %v231
    %354 = vmatpush1.msra.mxu0 %v230
    %355 = vmatprep.subr.mxu0 %v235
    %356 = vmatpush1.msra.mxu0 %v234
    %357 = vmatprep.subr.mxu0 %v239
    %358 = vmatpush1.msra.mxu0 %v238
    %359 = vmatprep.subr.mxu0 %v243
    %360 = vmatpush1.msra.mxu0 %v242
    %361 = vmatprep.subr.mxu0 %v247
    %362 = vmatpush1.msra.mxu0 %v246
    %363 = vmatprep.subr.mxu0 %v251
    %364 = vmatpush1.msra.mxu0 %v250
    %365 = vmatprep.subr.mxu0 %v255
    %366 = vmatpush1.msra.mxu0 %v254
    %367 = vmatprep.subr.mxu0 %v259
    %368 = vmatpush1.msra.mxu0 %v258
    %369 = vmatprep.subr.mxu0 0.0
    %370 = vmatpush1.msra.mxu0 0.0
    %371 = vmatprep.subr.mxu0 0.0
    %372 = vmatpush1.msra.mxu0 0.0
    %373 = vmatprep.subr.mxu0 0.0
    %374 = vmatpush1.msra.mxu0 0.0
    %375 = vmatprep.subr.mxu0 0.0
    %376 = vmatpush1.msra.mxu0 0.0
    %377 = vmatprep.subr.mxu0 0.0
    %378 = vmatpush1.msra.mxu0 0.0
    %379 = vmatprep.subr.mxu0 0.0
    %380 = vmatpush1.msra.mxu0 0.0
    %381 = vmatprep.subr.mxu0 0.0
    %382 = vmatpush1.msra.mxu0 0.0
    %383 = vmatprep.subr.mxu0 0.0
    %384 = vmatpush1.msra.mxu0 0.0
    %385 = vmatprep.subr.mxu0 0.0
    %386 = vmatpush1.msra.mxu0 0.0
    %387 = vmatprep.subr.mxu0 0.0
    %388 = vmatpush1.msra.mxu0 0.0
    %389 = vmatprep.subr.mxu0 0.0
    %390 = vmatpush1.msra.mxu0 0.0
    %391 = vmatprep.subr.mxu0 0.0
    %392 = vmatpush1.msra.mxu0 0.0
    %393 = vmatprep.subr.mxu0 0.0
    %394 = vmatpush1.msra.mxu0 0.0
    %395 = vmatprep.subr.mxu0 0.0
    %396 = vmatpush1.msra.mxu0 0.0
    %397 = vmatprep.subr.mxu0 0.0
    %398 = vmatpush1.msra.mxu0 0.0
    %399 = vmatprep.subr.mxu0 0.0
    %400 = vmatpush1.msra.mxu0 0.0
    %401 = vmatprep.mubr.f32.mxu0 0.0
    %402 = vmatmul.mubr.f32.gmra.mrb[0].mxu0 %v260
    %v403 = vpop.f32.mrb[0].mxu0
    %v404 = vadd.f32 0.0, %v403
    %v405 = vpop.f32.mrb[0].mxu0
    %v406 = vadd.f32 0.0, %v405
    %407 = vdwg.mxu0
    %v408 = vadd.f32 %v262, %v333
    %v409 = vadd.f32 %v263, %v335
    %v410 = vadd.f32 %v264, %v404
    %v411 = vadd.f32 %v265, %v406
    %v412 = vxor.u32 %v408, 2147483648
    %v413 = vxor.u32 %v409, 2147483648
    %v414 = vxor.u32 %v410, 2147483648
    %v415 = vmul.f32 %v412, 1.442695
    %v416 = vpow.pop %v415
    %v417 = vmul.f32 %v413, 1.442695
    %v418 = vpow.pop %v417
    %v419 = vmul.f32 %v414, 1.442695
    %v420 = vpow.pop %v419
    %v421 = vadd.f32 %v416, 1.0
    %v422 = vadd.f32 %v418, 1.0
    %v423 = vadd.f32 %v420, 1.0
    %v424 = vrcp.pop %v421
    %v425 = vmul.f32 1.0, %v424
    %v426 = vrcp.pop %v422
    %v427 = vmul.f32 1.0, %v426
    %v428 = vrcp.pop %v423
    %v429 = vmul.f32 1.0, %v428
    %v430 = vtanh.pop %v411
    %v431 = vmul.f32 %v430, %v425
    %v432 = vmul.f32 %v261, %v427
    %v433 = vadd.f32 %v431, %v432
    %v434 = vtanh.pop %v433
    %v435 = vmul.f32 %v434, %v429
    %436 = vst [vmem:[#allocation6] sm:$0xff] %v435
    %s437 = scalar_lea.vmem %s0, 32
    %v438 = vld [vmem:[%s437] sm:$0xff]
    %v439 = vld [vmem:[%s437 + $0x8] sm:$0xff]
    %v440 = vld [vmem:[%s437 + $0x10] sm:$0xff]
    %v441 = vld [vmem:[%s437 + $0x18] sm:$0xff]
    %442 = vmatprep.subr.mxu0 %v197
    %443 = vmatpush1.msra.mxu0 %v196
    %444 = vmatprep.subr.mxu0 %v201
    %445 = vmatpush1.msra.mxu0 %v200
    %446 = vmatprep.subr.mxu0 %v205
    %447 = vmatpush1.msra.mxu0 %v204
    %448 = vmatprep.subr.mxu0 %v209
    %449 = vmatpush1.msra.mxu0 %v208
    %450 = vmatprep.subr.mxu0 %v213
    %451 = vmatpush1.msra.mxu0 %v212
    %452 = vmatprep.subr.mxu0 %v217
    %453 = vmatpush1.msra.mxu0 %v216
    %454 = vmatprep.subr.mxu0 %v221
    %455 = vmatpush1.msra.mxu0 %v220
    %456 = vmatprep.subr.mxu0 %v225
    %457 = vmatpush1.msra.mxu0 %v224
    %458 = vmatprep.subr.mxu0 %v229
    %459 = vmatpush1.msra.mxu0 %v228
    %460 = vmatprep.subr.mxu0 %v233
    %461 = vmatpush1.msra.mxu0 %v232
    %462 = vmatprep.subr.mxu0 %v237
    %463 = vmatpush1.msra.mxu0 %v236
    %464 = vmatprep.subr.mxu0 %v241
    %465 = vmatpush1.msra.mxu0 %v240
    %466 = vmatprep.subr.mxu0 %v245
    %467 = vmatpush1.msra.mxu0 %v244
    %468 = vmatprep.subr.mxu0 %v249
    %469 = vmatpush1.msra.mxu0 %v248
    %470 = vmatprep.subr.mxu0 %v253
    %471 = vmatpush1.msra.mxu0 %v252
    %472 = vmatprep.subr.mxu0 %v257
    %473 = vmatpush1.msra.mxu0 %v256
    %474 = vmatprep.subr.mxu0 0.0
    %475 = vmatpush1.msra.mxu0 0.0
    %476 = vmatprep.subr.mxu0 0.0
    %477 = vmatpush1.msra.mxu0 0.0
    %478 = vmatprep.subr.mxu0 0.0
    %479 = vmatpush1.msra.mxu0 0.0
    %480 = vmatprep.subr.mxu0 0.0
    %481 = vmatpush1.msra.mxu0 0.0
    %482 = vmatprep.subr.mxu0 0.0
    %483 = vmatpush1.msra.mxu0 0.0
    %484 = vmatprep.subr.mxu0 0.0
    %485 = vmatpush1.msra.mxu0 0.0
    %486 = vmatprep.subr.mxu0 0.0
    %487 = vmatpush1.msra.mxu0 0.0
    %488 = vmatprep.subr.mxu0 0.0
    %489 = vmatpush1.msra.mxu0 0.0
    %490 = vmatprep.subr.mxu0 0.0
    %491 = vmatpush1.msra.mxu0 0.0
    %492 = vmatprep.subr.mxu0 0.0
    %493 = vmatpush1.msra.mxu0 0.0
    %494 = vmatprep.subr.mxu0 0.0
    %495 = vmatpush1.msra.mxu0 0.0
    %496 = vmatprep.subr.mxu0 0.0
    %497 = vmatpush1.msra.mxu0 0.0
    %498 = vmatprep.subr.mxu0 0.0
    %499 = vmatpush1.msra.mxu0 0.0
    %500 = vmatprep.subr.mxu0 0.0
    %501 = vmatpush1.msra.mxu0 0.0
    %502 = vmatprep.subr.mxu0 0.0
    %503 = vmatpush1.msra.mxu0 0.0
    %504 = vmatprep.subr.mxu0 0.0
    %505 = vmatpush1.msra.mxu0 0.0
    %506 = vmatprep.mubr.f32.mxu0 0.0
    %507 = vmatmul.mubr.f32.gmra.mrb[0].mxu0 %v435
    %v508 = vpop.f32.mrb[0].mxu0
    %v509 = vadd.f32 0.0, %v508
    %v510 = vpop.f32.mrb[0].mxu0
    %v511 = vadd.f32 0.0, %v510
    %512 = vdwg.mxu0
    %513 = vmatprep.subr.mxu0 %v199
    %514 = vmatpush1.msra.mxu0 %v198
    %515 = vmatprep.subr.mxu0 %v203
    %516 = vmatpush1.msra.mxu0 %v202
    %517 = vmatprep.subr.mxu0 %v207
    %518 = vmatpush1.msra.mxu0 %v206
    %519 = vmatprep.subr.mxu0 %v211
    %520 = vmatpush1.msra.mxu0 %v210
    %521 = vmatprep.subr.mxu0 %v215
    %522 = vmatpush1.msra.mxu0 %v214
    %523 = vmatprep.subr.mxu0 %v219
    %524 = vmatpush1.msra.mxu0 %v218
    %525 = vmatprep.subr.mxu0 %v223
    %526 = vmatpush1.msra.mxu0 %v222
    %527 = vmatprep.subr.mxu0 %v227
    %528 = vmatpush1.msra.mxu0 %v226
    %529 = vmatprep.subr.mxu0 %v231
    %530 = vmatpush1.msra.mxu0 %v230
    %531 = vmatprep.subr.mxu0 %v235
    %532 = vmatpush1.msra.mxu0 %v234
    %533 = vmatprep.subr.mxu0 %v239
    %534 = vmatpush1.msra.mxu0 %v238
    %535 = vmatprep.subr.mxu0 %v243
    %536 = vmatpush1.msra.mxu0 %v242
    %537 = vmatprep.subr.mxu0 %v247
    %538 = vmatpush1.msra.mxu0 %v246
    %539 = vmatprep.subr.mxu0 %v251
    %540 = vmatpush1.msra.mxu0 %v250
    %541 = vmatprep.subr.mxu0 %v255
    %542 = vmatpush1.msra.mxu0 %v254
    %543 = vmatprep.subr.mxu0 %v259
    %544 = vmatpush1.msra.mxu0 %v258
    %545 = vmatprep.subr.mxu0 0.0
    %546 = vmatpush1.msra.mxu0 0.0
    %547 = vmatprep.subr.mxu0 0.0
    %548 = vmatpush1.msra.mxu0 0.0
    %549 = vmatprep.subr.mxu0 0.0
    %550 = vmatpush1.msra.mxu0 0.0
    %551 = vmatprep.subr.mxu0 0.0
    %552 = vmatpush1.msra.mxu0 0.0
    %553 = vmatprep.subr.mxu0 0.0
    %554 = vmatpush1.msra.mxu0 0.0
    %555 = vmatprep.subr.mxu0 0.0
    %556 = vmatpush1.msra.mxu0 0.0
    %557 = vmatprep.subr.mxu0 0.0
    %558 = vmatpush1.msra.mxu0 0.0
    %559 = vmatprep.subr.mxu0 0.0
    %560 = vmatpush1.msra.mxu0 0.0
    %561 = vmatprep.subr.mxu0 0.0
    %562 = vmatpush1.msra.mxu0 0.0
    %563 = vmatprep.subr.mxu0 0.0
    %564 = vmatpush1.msra.mxu0 0.0
    %565 = vmatprep.subr.mxu0 0.0
    %566 = vmatpush1.msra.mxu0 0.0
    %567 = vmatprep.subr.mxu0 0.0
    %568 = vmatpush1.msra.mxu0 0.0
    %569 = vmatprep.subr.mxu0 0.0
    %570 = vmatpush1.msra.mxu0 0.0
    %571 = vmatprep.subr.mxu0 0.0
    %572 = vmatpush1.msra.mxu0 0.0
    %573 = vmatprep.subr.mxu0 0.0
    %574 = vmatpush1.msra.mxu0 0.0
    %575 = vmatprep.subr.mxu0 0.0
    %576 = vmatpush1.msra.mxu0 0.0
    %577 = vmatprep.mubr.f32.mxu0 0.0
    %578 = vmatmul.mubr.f32.gmra.mrb[0].mxu0 %v435
    %v579 = vpop.f32.mrb[0].mxu0
    %v580 = vadd.f32 0.0, %v579
    %v581 = vpop.f32.mrb[0].mxu0
    %v582 = vadd.f32 0.0, %v581
    %583 = vdwg.mxu0
    %v584 = vadd.f32 %v438, %v509
    %v585 = vadd.f32 %v439, %v511
    %v586 = vadd.f32 %v440, %v580
    %v587 = vadd.f32 %v441, %v582
    %v588 = vxor.u32 %v584, 2147483648
    %v589 = vxor.u32 %v585, 2147483648
    %v590 = vxor.u32 %v586, 2147483648
    %v591 = vmul.f32 %v588, 1.442695
    %v592 = vpow.pop %v591
    %v593 = vmul.f32 %v589, 1.442695
    %v594 = vpow.pop %v593
    %v595 = vmul.f32 %v590, 1.442695
    %v596 = vpow.pop %v595
    %v597 = vadd.f32 %v592, 1.0
    %v598 = vadd.f32 %v594, 1.0
    %v599 = vadd.f32 %v596, 1.0
    %v600 = vrcp.pop %v597
    %v601 = vmul.f32 1.0, %v600
    %v602 = vrcp.pop %v598
    %v603 = vmul.f32 1.0, %v602
    %v604 = vrcp.pop %v599
    %v605 = vmul.f32 1.0, %v604
    %v606 = vtanh.pop %v587
    %v607 = vmul.f32 %v606, %v601
    %v608 = vmul.f32 %v433, %v603
    %v609 = vadd.f32 %v607, %v608
    %v610 = vtanh.pop %v609
    %v611 = vmul.f32 %v610, %v605
    %s612 = scalar_lea.vmem [#allocation6], 8
    %613 = vst [vmem:[%s612] sm:$0xff] %v611
    %s614 = scalar_lea.vmem %s0, 64
    %v615 = vld [vmem:[%s614] sm:$0xff]
    %v616 = vld [vmem:[%s614 + $0x8] sm:$0xff]
    %v617 = vld [vmem:[%s614 + $0x10] sm:$0xff]
    %v618 = vld [vmem:[%s614 + $0x18] sm:$0xff]
    %619 = vmatprep.subr.mxu0 %v197
    %620 = vmatpush1.msra.mxu0 %v196
    %621 = vmatprep.subr.mxu0 %v201
    %622 = vmatpush1.msra.mxu0 %v200
    %623 = vmatprep.subr.mxu0 %v205
    %624 = vmatpush1.msra.mxu0 %v204
    %625 = vmatprep.subr.mxu0 %v209
    %626 = vmatpush1.msra.mxu0 %v208
    %627 = vmatprep.subr.mxu0 %v213
    %628 = vmatpush1.msra.mxu0 %v212
    %629 = vmatprep.subr.mxu0 %v217
    %630 = vmatpush1.msra.mxu0 %v216
    %631 = vmatprep.subr.mxu0 %v221
    %632 = vmatpush1.msra.mxu0 %v220
    %633 = vmatprep.subr.mxu0 %v225
    %634 = vmatpush1.msra.mxu0 %v224
    %635 = vmatprep.subr.mxu0 %v229
    %636 = vmatpush1.msra.mxu0 %v228
    %637 = vmatprep.subr.mxu0 %v233
    %638 = vmatpush1.msra.mxu0 %v232
    %639 = vmatprep.subr.mxu0 %v237
    %640 = vmatpush1.msra.mxu0 %v236
    %641 = vmatprep.subr.mxu0 %v241
    %642 = vmatpush1.msra.mxu0 %v240
    %643 = vmatprep.subr.mxu0 %v245
    %644 = vmatpush1.msra.mxu0 %v244
    %645 = vmatprep.subr.mxu0 %v249
    %646 = vmatpush1.msra.mxu0 %v248
    %647 = vmatprep.subr.mxu0 %v253
    %648 = vmatpush1.msra.mxu0 %v252
    %649 = vmatprep.subr.mxu0 %v257
    %650 = vmatpush1.msra.mxu0 %v256
    %651 = vmatprep.subr.mxu0 0.0
    %652 = vmatpush1.msra.mxu0 0.0
    %653 = vmatprep.subr.mxu0 0.0
    %654 = vmatpush1.msra.mxu0 0.0
    %655 = vmatprep.subr.mxu0 0.0
    %656 = vmatpush1.msra.mxu0 0.0
    %657 = vmatprep.subr.mxu0 0.0
    %658 = vmatpush1.msra.mxu0 0.0
    %659 = vmatprep.subr.mxu0 0.0
    %660 = vmatpush1.msra.mxu0 0.0
    %661 = vmatprep.subr.mxu0 0.0
    %662 = vmatpush1.msra.mxu0 0.0
    %663 = vmatprep.subr.mxu0 0.0
    %664 = vmatpush1.msra.mxu0 0.0
    %665 = vmatprep.subr.mxu0 0.0
    %666 = vmatpush1.msra.mxu0 0.0
    %667 = vmatprep.subr.mxu0 0.0
    %668 = vmatpush1.msra.mxu0 0.0
    %669 = vmatprep.subr.mxu0 0.0
    %670 = vmatpush1.msra.mxu0 0.0
    %671 = vmatprep.subr.mxu0 0.0
    %672 = vmatpush1.msra.mxu0 0.0
    %673 = vmatprep.subr.mxu0 0.0
    %674 = vmatpush1.msra.mxu0 0.0
    %675 = vmatprep.subr.mxu0 0.0
    %676 = vmatpush1.msra.mxu0 0.0
    %677 = vmatprep.subr.mxu0 0.0
    %678 = vmatpush1.msra.mxu0 0.0
    %679 = vmatprep.subr.mxu0 0.0
    %680 = vmatpush1.msra.mxu0 0.0
    %681 = vmatprep.subr.mxu0 0.0
    %682 = vmatpush1.msra.mxu0 0.0
    %683 = vmatprep.mubr.f32.mxu0 0.0
    %684 = vmatmul.mubr.f32.gmra.mrb[0].mxu0 %v611
    %v685 = vpop.f32.mrb[0].mxu0
    %v686 = vadd.f32 0.0, %v685
    %v687 = vpop.f32.mrb[0].mxu0
    %v688 = vadd.f32 0.0, %v687
    %689 = vdwg.mxu0
    %690 = vmatprep.subr.mxu0 %v199
    %691 = vmatpush1.msra.mxu0 %v198
    %692 = vmatprep.subr.mxu0 %v203
    %693 = vmatpush1.msra.mxu0 %v202
    %694 = vmatprep.subr.mxu0 %v207
    %695 = vmatpush1.msra.mxu0 %v206
    %696 = vmatprep.subr.mxu0 %v211
    %697 = vmatpush1.msra.mxu0 %v210
    %698 = vmatprep.subr.mxu0 %v215
    %699 = vmatpush1.msra.mxu0 %v214
    %700 = vmatprep.subr.mxu0 %v219
    %701 = vmatpush1.msra.mxu0 %v218
    %702 = vmatprep.subr.mxu0 %v223
    %703 = vmatpush1.msra.mxu0 %v222
    %704 = vmatprep.subr.mxu0 %v227
    %705 = vmatpush1.msra.mxu0 %v226
    %706 = vmatprep.subr.mxu0 %v231
    %707 = vmatpush1.msra.mxu0 %v230
    %708 = vmatprep.subr.mxu0 %v235
    %709 = vmatpush1.msra.mxu0 %v234
    %710 = vmatprep.subr.mxu0 %v239
    %711 = vmatpush1.msra.mxu0 %v238
    %712 = vmatprep.subr.mxu0 %v243
    %713 = vmatpush1.msra.mxu0 %v242
    %714 = vmatprep.subr.mxu0 %v247
    %715 = vmatpush1.msra.mxu0 %v246
    %716 = vmatprep.subr.mxu0 %v251
    %717 = vmatpush1.msra.mxu0 %v250
    %718 = vmatprep.subr.mxu0 %v255
    %719 = vmatpush1.msra.mxu0 %v254
    %720 = vmatprep.subr.mxu0 %v259
    %721 = vmatpush1.msra.mxu0 %v258
    %722 = vmatprep.subr.mxu0 0.0
    %723 = vmatpush1.msra.mxu0 0.0
    %724 = vmatprep.subr.mxu0 0.0
    %725 = vmatpush1.msra.mxu0 0.0
    %726 = vmatprep.subr.mxu0 0.0
    %727 = vmatpush1.msra.mxu0 0.0
    %728 = vmatprep.subr.mxu0 0.0
    %729 = vmatpush1.msra.mxu0 0.0
    %730 = vmatprep.subr.mxu0 0.0
    %731 = vmatpush1.msra.mxu0 0.0
    %732 = vmatprep.subr.mxu0 0.0
    %733 = vmatpush1.msra.mxu0 0.0
    %734 = vmatprep.subr.mxu0 0.0
    %735 = vmatpush1.msra.mxu0 0.0
    %736 = vmatprep.subr.mxu0 0.0
    %737 = vmatpush1.msra.mxu0 0.0
    %738 = vmatprep.subr.mxu0 0.0
    %739 = vmatpush1.msra.mxu0 0.0
    %740 = vmatprep.subr.mxu0 0.0
    %741 = vmatpush1.msra.mxu0 0.0
    %742 = vmatprep.subr.mxu0 0.0
    %743 = vmatpush1.msra.mxu0 0.0
    %744 = vmatprep.subr.mxu0 0.0
    %745 = vmatpush1.msra.mxu0 0.0
    %746 = vmatprep.subr.mxu0 0.0
    %747 = vmatpush1.msra.mxu0 0.0
    %748 = vmatprep.subr.mxu0 0.0
    %749 = vmatpush1.msra.mxu0 0.0
    %750 = vmatprep.subr.mxu0 0.0
    %751 = vmatpush1.msra.mxu0 0.0
    %752 = vmatprep.subr.mxu0 0.0
    %753 = vmatpush1.msra.mxu0 0.0
    %754 = vmatprep.mubr.f32.mxu0 0.0
    %755 = vmatmul.mubr.f32.gmra.mrb[0].mxu0 %v611
    %v756 = vpop.f32.mrb[0].mxu0
    %v757 = vadd.f32 0.0, %v756
    %v758 = vpop.f32.mrb[0].mxu0
    %v759 = vadd.f32 0.0, %v758
    %760 = vdwg.mxu0
    %v761 = vadd.f32 %v615, %v686
    %v762 = vadd.f32 %v616, %v688
    %v763 = vadd.f32 %v617, %v757
    %v764 = vadd.f32 %v618, %v759
    %v765 = vxor.u32 %v761, 2147483648
    %v766 = vxor.u32 %v762, 2147483648
    %v767 = vxor.u32 %v763, 2147483648
    %v768 = vmul.f32 %v765, 1.442695
    %v769 = vpow.pop %v768
    %v770 = vmul.f32 %v766, 1.442695
    %v771 = vpow.pop %v770
    %v772 = vmul.f32 %v767, 1.442695
    %v773 = vpow.pop %v772
    %v774 = vadd.f32 %v769, 1.0
    %v775 = vadd.f32 %v771, 1.0
    %v776 = vadd.f32 %v773, 1.0
    %v777 = vrcp.pop %v774
    %v778 = vmul.f32 1.0, %v777
    %v779 = vrcp.pop %v775
    %v780 = vmul.f32 1.0, %v779
    %v781 = vrcp.pop %v776
    %v782 = vmul.f32 1.0, %v781
    %v783 = vtanh.pop %v764
    %v784 = vmul.f32 %v783, %v778
    %v785 = vmul.f32 %v609, %v780
    %v786 = vadd.f32 %v784, %v785
    %v787 = vtanh.pop %v786
    %v788 = vmul.f32 %v787, %v782
    %s789 = scalar_lea.vmem [#allocation6], 16
    %790 = vst [vmem:[%s789] sm:$0xff] %v788
    %s791 = scalar_lea.vmem %s0, 96
    %v792 = vld [vmem:[%s791] sm:$0xff]
    %v793 = vld [vmem:[%s791 + $0x8] sm:$0xff]
    %v794 = vld [vmem:[%s791 + $0x10] sm:$0xff]
    %v795 = vld [vmem:[%s791 + $0x18] sm:$0xff]
    %796 = vmatprep.subr.mxu0 %v197
    %797 = vmatpush1.msra.mxu0 %v196
    %798 = vmatprep.subr.mxu0 %v201
    %799 = vmatpush1.msra.mxu0 %v200
    %800 = vmatprep.subr.mxu0 %v205
    %801 = vmatpush1.msra.mxu0 %v204
    %802 = vmatprep.subr.mxu0 %v209
    %803 = vmatpush1.msra.mxu0 %v208
    %804 = vmatprep.subr.mxu0 %v213
    %805 = vmatpush1.msra.mxu0 %v212
    %806 = vmatprep.subr.mxu0 %v217
    %807 = vmatpush1.msra.mxu0 %v216
    %808 = vmatprep.subr.mxu0 %v221
    %809 = vmatpush1.msra.mxu0 %v220
    %810 = vmatprep.subr.mxu0 %v225
    %811 = vmatpush1.msra.mxu0 %v224
    %812 = vmatprep.subr.mxu0 %v229
    %813 = vmatpush1.msra.mxu0 %v228
    %814 = vmatprep.subr.mxu0 %v233
    %815 = vmatpush1.msra.mxu0 %v232
    %816 = vmatprep.subr.mxu0 %v237
    %817 = vmatpush1.msra.mxu0 %v236
    %818 = vmatprep.subr.mxu0 %v241
    %819 = vmatpush1.msra.mxu0 %v240
    %820 = vmatprep.subr.mxu0 %v245
    %821 = vmatpush1.msra.mxu0 %v244
    %822 = vmatprep.subr.mxu0 %v249
    %823 = vmatpush1.msra.mxu0 %v248
    %824 = vmatprep.subr.mxu0 %v253
    %825 = vmatpush1.msra.mxu0 %v252
    %826 = vmatprep.subr.mxu0 %v257
    %827 = vmatpush1.msra.mxu0 %v256
    %828 = vmatprep.subr.mxu0 0.0
    %829 = vmatpush1.msra.mxu0 0.0
    %830 = vmatprep.subr.mxu0 0.0
    %831 = vmatpush1.msra.mxu0 0.0
    %832 = vmatprep.subr.mxu0 0.0
    %833 = vmatpush1.msra.mxu0 0.0
    %834 = vmatprep.subr.mxu0 0.0
    %835 = vmatpush1.msra.mxu0 0.0
    %836 = vmatprep.subr.mxu0 0.0
    %837 = vmatpush1.msra.mxu0 0.0
    %838 = vmatprep.subr.mxu0 0.0
    %839 = vmatpush1.msra.mxu0 0.0
    %840 = vmatprep.subr.mxu0 0.0
    %841 = vmatpush1.msra.mxu0 0.0
    %842 = vmatprep.subr.mxu0 0.0
    %843 = vmatpush1.msra.mxu0 0.0
    %844 = vmatprep.subr.mxu0 0.0
    %845 = vmatpush1.msra.mxu0 0.0
    %846 = vmatprep.subr.mxu0 0.0
    %847 = vmatpush1.msra.mxu0 0.0
    %848 = vmatprep.subr.mxu0 0.0
    %849 = vmatpush1.msra.mxu0 0.0
    %850 = vmatprep.subr.mxu0 0.0
    %851 = vmatpush1.msra.mxu0 0.0
    %852 = vmatprep.subr.mxu0 0.0
    %853 = vmatpush1.msra.mxu0 0.0
    %854 = vmatprep.subr.mxu0 0.0
    %855 = vmatpush1.msra.mxu0 0.0
    %856 = vmatprep.subr.mxu0 0.0
    %857 = vmatpush1.msra.mxu0 0.0
    %858 = vmatprep.subr.mxu0 0.0
    %859 = vmatpush1.msra.mxu0 0.0
    %860 = vmatprep.mubr.f32.mxu0 0.0
    %861 = vmatmul.mubr.f32.gmra.mrb[0].mxu0 %v788
    %v862 = vpop.f32.mrb[0].mxu0
    %v863 = vadd.f32 0.0, %v862
    %v864 = vpop.f32.mrb[0].mxu0
    %v865 = vadd.f32 0.0, %v864
    %866 = vdwg.mxu0
    %867 = vmatprep.subr.mxu0 %v199
    %868 = vmatpush1.msra.mxu0 %v198
    %869 = vmatprep.subr.mxu0 %v203
    %870 = vmatpush1.msra.mxu0 %v202
    %871 = vmatprep.subr.mxu0 %v207
    %872 = vmatpush1.msra.mxu0 %v206
    %873 = vmatprep.subr.mxu0 %v211
    %874 = vmatpush1.msra.mxu0 %v210
    %875 = vmatprep.subr.mxu0 %v215
    %876 = vmatpush1.msra.mxu0 %v214
    %877 = vmatprep.subr.mxu0 %v219
    %878 = vmatpush1.msra.mxu0 %v218
    %879 = vmatprep.subr.mxu0 %v223
    %880 = vmatpush1.msra.mxu0 %v222
    %881 = vmatprep.subr.mxu0 %v227
    %882 = vmatpush1.msra.mxu0 %v226
    %883 = vmatprep.subr.mxu0 %v231
    %884 = vmatpush1.msra.mxu0 %v230
    %885 = vmatprep.subr.mxu0 %v235
    %886 = vmatpush1.msra.mxu0 %v234
    %887 = vmatprep.subr.mxu0 %v239
    %888 = vmatpush1.msra.mxu0 %v238
    %889 = vmatprep.subr.mxu0 %v243
    %890 = vmatpush1.msra.mxu0 %v242
    %891 = vmatprep.subr.mxu0 %v247
    %892 = vmatpush1.msra.mxu0 %v246
    %893 = vmatprep.subr.mxu0 %v251
    %894 = vmatpush1.msra.mxu0 %v250
    %895 = vmatprep.subr.mxu0 %v255
    %896 = vmatpush1.msra.mxu0 %v254
    %897 = vmatprep.subr.mxu0 %v259
    %898 = vmatpush1.msra.mxu0 %v258
    %899 = vmatprep.subr.mxu0 0.0
    %900 = vmatpush1.msra.mxu0 0.0
    %901 = vmatprep.subr.mxu0 0.0
    %902 = vmatpush1.msra.mxu0 0.0
    %903 = vmatprep.subr.mxu0 0.0
    %904 = vmatpush1.msra.mxu0 0.0
    %905 = vmatprep.subr.mxu0 0.0
    %906 = vmatpush1.msra.mxu0 0.0
    %907 = vmatprep.subr.mxu0 0.0
    %908 = vmatpush1.msra.mxu0 0.0
    %909 = vmatprep.subr.mxu0 0.0
    %910 = vmatpush1.msra.mxu0 0.0
    %911 = vmatprep.subr.mxu0 0.0
    %912 = vmatpush1.msra.mxu0 0.0
    %913 = vmatprep.subr.mxu0 0.0
    %914 = vmatpush1.msra.mxu0 0.0
    %915 = vmatprep.subr.mxu0 0.0
    %916 = vmatpush1.msra.mxu0 0.0
    %917 = vmatprep.subr.mxu0 0.0
    %918 = vmatpush1.msra.mxu0 0.0
    %919 = vmatprep.subr.mxu0 0.0
    %920 = vmatpush1.msra.mxu0 0.0
    %921 = vmatprep.subr.mxu0 0.0
    %922 = vmatpush1.msra.mxu0 0.0
    %923 = vmatprep.subr.mxu0 0.0
    %924 = vmatpush1.msra.mxu0 0.0
    %925 = vmatprep.subr.mxu0 0.0
    %926 = vmatpush1.msra.mxu0 0.0
    %927 = vmatprep.subr.mxu0 0.0
    %928 = vmatpush1.msra.mxu0 0.0
    %929 = vmatprep.subr.mxu0 0.0
    %930 = vmatpush1.msra.mxu0 0.0
    %931 = vmatprep.mubr.f32.mxu0 0.0
    %932 = vmatmul.mubr.f32.gmra.mrb[0].mxu0 %v788
    %v933 = vpop.f32.mrb[0].mxu0
    %v934 = vadd.f32 0.0, %v933
    %v935 = vpop.f32.mrb[0].mxu0
    %v936 = vadd.f32 0.0, %v935
    %937 = vdwg.mxu0
    %v938 = vadd.f32 %v792, %v863
    %v939 = vadd.f32 %v793, %v865
    %v940 = vadd.f32 %v794, %v934
    %v941 = vadd.f32 %v795, %v936
    %v942 = vxor.u32 %v938, 2147483648
    %v943 = vxor.u32 %v939, 2147483648
    %v944 = vxor.u32 %v940, 2147483648
    %v945 = vmul.f32 %v942, 1.442695
    %v946 = vpow.pop %v945
    %v947 = vmul.f32 %v943, 1.442695
    %v948 = vpow.pop %v947
    %v949 = vmul.f32 %v944, 1.442695
    %v950 = vpow.pop %v949
    %v951 = vadd.f32 %v946, 1.0
    %v952 = vadd.f32 %v948, 1.0
    %v953 = vadd.f32 %v950, 1.0
    %v954 = vrcp.pop %v951
    %v955 = vmul.f32 1.0, %v954
    %v956 = vrcp.pop %v952
    %v957 = vmul.f32 1.0, %v956
    %v958 = vrcp.pop %v953
    %v959 = vmul.f32 1.0, %v958
    %v960 = vtanh.pop %v941
    %v961 = vmul.f32 %v960, %v955
    %v962 = vmul.f32 %v786, %v957
    %v963 = vadd.f32 %v961, %v962
    %v964 = vtanh.pop %v963
    %v965 = vmul.f32 %v964, %v959
    %s966 = scalar_lea.vmem [#allocation6], 24
    %967 = vst [vmem:[%s966] sm:$0xff] %v965
    %s968 = scalar_lea.vmem %s0, 128
    %v969 = vld [vmem:[%s968] sm:$0xff]
    %v970 = vld [vmem:[%s968 + $0x8] sm:$0xff]
    %v971 = vld [vmem:[%s968 + $0x10] sm:$0xff]
    %v972 = vld [vmem:[%s968 + $0x18] sm:$0xff]
    %973 = vmatprep.subr.mxu0 %v197
    %974 = vmatpush1.msra.mxu0 %v196
    %975 = vmatprep.subr.mxu0 %v201
    %976 = vmatpush1.msra.mxu0 %v200
    %977 = vmatprep.subr.mxu0 %v205
    %978 = vmatpush1.msra.mxu0 %v204
    %979 = vmatprep.subr.mxu0 %v209
    %980 = vmatpush1.msra.mxu0 %v208
    %981 = vmatprep.subr.mxu0 %v213
    %982 = vmatpush1.msra.mxu0 %v212
    %983 = vmatprep.subr.mxu0 %v217
    %984 = vmatpush1.msra.mxu0 %v216
    %985 = vmatprep.subr.mxu0 %v221
    %986 = vmatpush1.msra.mxu0 %v220
    %987 = vmatprep.subr.mxu0 %v225
    %988 = vmatpush1.msra.mxu0 %v224
    %989 = vmatprep.subr.mxu0 %v229
    %990 = vmatpush1.msra.mxu0 %v228
    %991 = vmatprep.subr.mxu0 %v233
    %992 = vmatpush1.msra.mxu0 %v232
    %993 = vmatprep.subr.mxu0 %v237
    %994 = vmatpush1.msra.mxu0 %v236
    %995 = vmatprep.subr.mxu0 %v241
    %996 = vmatpush1.msra.mxu0 %v240
    %997 = vmatprep.subr.mxu0 %v245
    %998 = vmatpush1.msra.mxu0 %v244
    %999 = vmatprep.subr.mxu0 %v249
    %1000 = vmatpush1.msra.mxu0 %v248
    %1001 = vmatprep.subr.mxu0 %v253
    %1002 = vmatpush1.msra.mxu0 %v252
    %1003 = vmatprep.subr.mxu0 %v257
    %1004 = vmatpush1.msra.mxu0 %v256
    %1005 = vmatprep.subr.mxu0 0.0
    %1006 = vmatpush1.msra.mxu0 0.0
    %1007 = vmatprep.subr.mxu0 0.0
    %1008 = vmatpush1.msra.mxu0 0.0
    %1009 = vmatprep.subr.mxu0 0.0
    %1010 = vmatpush1.msra.mxu0 0.0
    %1011 = vmatprep.subr.mxu0 0.0
    %1012 = vmatpush1.msra.mxu0 0.0
    %1013 = vmatprep.subr.mxu0 0.0
    %1014 = vmatpush1.msra.mxu0 0.0
    %1015 = vmatprep.subr.mxu0 0.0
    %1016 = vmatpush1.msra.mxu0 0.0
    %1017 = vmatprep.subr.mxu0 0.0
    %1018 = vmatpush1.msra.mxu0 0.0
    %1019 = vmatprep.subr.mxu0 0.0
    %1020 = vmatpush1.msra.mxu0 0.0
    %1021 = vmatprep.subr.mxu0 0.0
    %1022 = vmatpush1.msra.mxu0 0.0
    %1023 = vmatprep.subr.mxu0 0.0
    %1024 = vmatpush1.msra.mxu0 0.0
    %1025 = vmatprep.subr.mxu0 0.0
    %1026 = vmatpush1.msra.mxu0 0.0
    %1027 = vmatprep.subr.mxu0 0.0
    %1028 = vmatpush1.msra.mxu0 0.0
    %1029 = vmatprep.subr.mxu0 0.0
    %1030 = vmatpush1.msra.mxu0 0.0
    %1031 = vmatprep.subr.mxu0 0.0
    %1032 = vmatpush1.msra.mxu0 0.0
    %1033 = vmatprep.subr.mxu0 0.0
    %1034 = vmatpush1.msra.mxu0 0.0
    %1035 = vmatprep.subr.mxu0 0.0
    %1036 = vmatpush1.msra.mxu0 0.0
    %1037 = vmatprep.mubr.f32.mxu0 0.0
    %1038 = vmatmul.mubr.f32.gmra.mrb[0].mxu0 %v965
    %v1039 = vpop.f32.mrb[0].mxu0
    %v1040 = vadd.f32 0.0, %v1039
    %v1041 = vpop.f32.mrb[0].mxu0
    %v1042 = vadd.f32 0.0, %v1041
    %1043 = vdwg.mxu0
    %1044 = vmatprep.subr.mxu0 %v199
    %1045 = vmatpush1.msra.mxu0 %v198
    %1046 = vmatprep.subr.mxu0 %v203
    %1047 = vmatpush1.msra.mxu0 %v202
    %1048 = vmatprep.subr.mxu0 %v207
    %1049 = vmatpush1.msra.mxu0 %v206
    %1050 = vmatprep.subr.mxu0 %v211
    %1051 = vmatpush1.msra.mxu0 %v210
    %1052 = vmatprep.subr.mxu0 %v215
    %1053 = vmatpush1.msra.mxu0 %v214
    %1054 = vmatprep.subr.mxu0 %v219
    %1055 = vmatpush1.msra.mxu0 %v218
    %1056 = vmatprep.subr.mxu0 %v223
    %1057 = vmatpush1.msra.mxu0 %v222
    %1058 = vmatprep.subr.mxu0 %v227
    %1059 = vmatpush1.msra.mxu0 %v226
    %1060 = vmatprep.subr.mxu0 %v231
    %1061 = vmatpush1.msra.mxu0 %v230
    %1062 = vmatprep.subr.mxu0 %v235
    %1063 = vmatpush1.msra.mxu0 %v234
    %1064 = vmatprep.subr.mxu0 %v239
    %1065 = vmatpush1.msra.mxu0 %v238
    %1066 = vmatprep.subr.mxu0 %v243
    %1067 = vmatpush1.msra.mxu0 %v242
    %1068 = vmatprep.subr.mxu0 %v247
    %1069 = vmatpush1.msra.mxu0 %v246
    %1070 = vmatprep.subr.mxu0 %v251
    %1071 = vmatpush1.msra.mxu0 %v250
    %1072 = vmatprep.subr.mxu0 %v255
    %1073 = vmatpush1.msra.mxu0 %v254
    %1074 = vmatprep.subr.mxu0 %v259
    %1075 = vmatpush1.msra.mxu0 %v258
    %1076 = vmatprep.subr.mxu0 0.0
    %1077 = vmatpush1.msra.mxu0 0.0
    %1078 = vmatprep.subr.mxu0 0.0
    %1079 = vmatpush1.msra.mxu0 0.0
    %1080 = vmatprep.subr.mxu0 0.0
    %1081 = vmatpush1.msra.mxu0 0.0
    %1082 = vmatprep.subr.mxu0 0.0
    %1083 = vmatpush1.msra.mxu0 0.0
    %1084 = vmatprep.subr.mxu0 0.0
    %1085 = vmatpush1.msra.mxu0 0.0
    %1086 = vmatprep.subr.mxu0 0.0
    %1087 = vmatpush1.msra.mxu0 0.0
    %1088 = vmatprep.subr.mxu0 0.0
    %1089 = vmatpush1.msra.mxu0 0.0
    %1090 = vmatprep.subr.mxu0 0.0
    %1091 = vmatpush1.msra.mxu0 0.0
    %1092 = vmatprep.subr.mxu0 0.0
    %1093 = vmatpush1.msra.mxu0 0.0
    %1094 = vmatprep.subr.mxu0 0.0
    %1095 = vmatpush1.msra.mxu0 0.0
    %1096 = vmatprep.subr.mxu0 0.0
    %1097 = vmatpush1.msra.mxu0 0.0
    %1098 = vmatprep.subr.mxu0 0.0
    %1099 = vmatpush1.msra.mxu0 0.0
    %1100 = vmatprep.subr.mxu0 0.0
    %1101 = vmatpush1.msra.mxu0 0.0
    %1102 = vmatprep.subr.mxu0 0.0
    %1103 = vmatpush1.msra.mxu0 0.0
    %1104 = vmatprep.subr.mxu0 0.0
    %1105 = vmatpush1.msra.mxu0 0.0
    %1106 = vmatprep.subr.mxu0 0.0
    %1107 = vmatpush1.msra.mxu0 0.0
    %1108 = vmatprep.mubr.f32.mxu0 0.0
    %1109 = vmatmul.mubr.f32.gmra.mrb[0].mxu0 %v965
    %v1110 = vpop.f32.mrb[0].mxu0
    %v1111 = vadd.f32 0.0, %v1110
    %v1112 = vpop.f32.mrb[0].mxu0
    %v1113 = vadd.f32 0.0, %v1112
    %1114 = vdwg.mxu0
    %v1115 = vadd.f32 %v969, %v1040
    %v1116 = vadd.f32 %v970, %v1042
    %v1117 = vadd.f32 %v971, %v1111
    %v1118 = vadd.f32 %v972, %v1113
    %v1119 = vxor.u32 %v1115, 2147483648
    %v1120 = vxor.u32 %v1116, 2147483648
    %v1121 = vxor.u32 %v1117, 2147483648
    %v1122 = vmul.f32 %v1119, 1.442695
    %v1123 = vpow.pop %v1122
    %v1124 = vmul.f32 %v1120, 1.442695
    %v1125 = vpow.pop %v1124
    %v1126 = vmul.f32 %v1121, 1.442695
    %v1127 = vpow.pop %v1126
    %v1128 = vadd.f32 %v1123, 1.0
    %v1129 = vadd.f32 %v1125, 1.0
    %v1130 = vadd.f32 %v1127, 1.0
    %v1131 = vrcp.pop %v1128
    %v1132 = vmul.f32 1.0, %v1131
    %v1133 = vrcp.pop %v1129
    %v1134 = vmul.f32 1.0, %v1133
    %v1135 = vrcp.pop %v1130
    %v1136 = vmul.f32 1.0, %v1135
    %v1137 = vtanh.pop %v1118
    %v1138 = vmul.f32 %v1137, %v1132
    %v1139 = vmul.f32 %v963, %v1134
    %v1140 = vadd.f32 %v1138, %v1139
    %v1141 = vtanh.pop %v1140
    %v1142 = vmul.f32 %v1141, %v1136
    %s1143 = scalar_lea.vmem [#allocation6], 32
    %1144 = vst [vmem:[%s1143] sm:$0xff] %v1142
    %s1145 = scalar_lea.vmem %s0, 160
    %v1146 = vld [vmem:[%s1145] sm:$0xff]
    %v1147 = vld [vmem:[%s1145 + $0x8] sm:$0xff]
    %v1148 = vld [vmem:[%s1145 + $0x10] sm:$0xff]
    %v1149 = vld [vmem:[%s1145 + $0x18] sm:$0xff]
    %1150 = vmatprep.subr.mxu0 %v197
    %1151 = vmatpush1.msra.mxu0 %v196
    %1152 = vmatprep.subr.mxu0 %v201
    %1153 = vmatpush1.msra.mxu0 %v200
    %1154 = vmatprep.subr.mxu0 %v205
    %1155 = vmatpush1.msra.mxu0 %v204
    %1156 = vmatprep.subr.mxu0 %v209
    %1157 = vmatpush1.msra.mxu0 %v208
    %1158 = vmatprep.subr.mxu0 %v213
    %1159 = vmatpush1.msra.mxu0 %v212
    %1160 = vmatprep.subr.mxu0 %v217
    %1161 = vmatpush1.msra.mxu0 %v216
    %1162 = vmatprep.subr.mxu0 %v221
    %1163 = vmatpush1.msra.mxu0 %v220
    %1164 = vmatprep.subr.mxu0 %v225
    %1165 = vmatpush1.msra.mxu0 %v224
    %1166 = vmatprep.subr.mxu0 %v229
    %1167 = vmatpush1.msra.mxu0 %v228
    %1168 = vmatprep.subr.mxu0 %v233
    %1169 = vmatpush1.msra.mxu0 %v232
    %1170 = vmatprep.subr.mxu0 %v237
    %1171 = vmatpush1.msra.mxu0 %v236
    %1172 = vmatprep.subr.mxu0 %v241
    %1173 = vmatpush1.msra.mxu0 %v240
    %1174 = vmatprep.subr.mxu0 %v245
    %1175 = vmatpush1.msra.mxu0 %v244
    %1176 = vmatprep.subr.mxu0 %v249
    %1177 = vmatpush1.msra.mxu0 %v248
    %1178 = vmatprep.subr.mxu0 %v253
    %1179 = vmatpush1.msra.mxu0 %v252
    %1180 = vmatprep.subr.mxu0 %v257
    %1181 = vmatpush1.msra.mxu0 %v256
    %1182 = vmatprep.subr.mxu0 0.0
    %1183 = vmatpush1.msra.mxu0 0.0
    %1184 = vmatprep.subr.mxu0 0.0
    %1185 = vmatpush1.msra.mxu0 0.0
    %1186 = vmatprep.subr.mxu0 0.0
    %1187 = vmatpush1.msra.mxu0 0.0
    %1188 = vmatprep.subr.mxu0 0.0
    %1189 = vmatpush1.msra.mxu0 0.0
    %1190 = vmatprep.subr.mxu0 0.0
    %1191 = vmatpush1.msra.mxu0 0.0
    %1192 = vmatprep.subr.mxu0 0.0
    %1193 = vmatpush1.msra.mxu0 0.0
    %1194 = vmatprep.subr.mxu0 0.0
    %1195 = vmatpush1.msra.mxu0 0.0
    %1196 = vmatprep.subr.mxu0 0.0
    %1197 = vmatpush1.msra.mxu0 0.0
    %1198 = vmatprep.subr.mxu0 0.0
    %1199 = vmatpush1.msra.mxu0 0.0
    %1200 = vmatprep.subr.mxu0 0.0
    %1201 = vmatpush1.msra.mxu0 0.0
    %1202 = vmatprep.subr.mxu0 0.0
    %1203 = vmatpush1.msra.mxu0 0.0
    %1204 = vmatprep.subr.mxu0 0.0
    %1205 = vmatpush1.msra.mxu0 0.0
    %1206 = vmatprep.subr.mxu0 0.0
    %1207 = vmatpush1.msra.mxu0 0.0
    %1208 = vmatprep.subr.mxu0 0.0
    %1209 = vmatpush1.msra.mxu0 0.0
    %1210 = vmatprep.subr.mxu0 0.0
    %1211 = vmatpush1.msra.mxu0 0.0
    %1212 = vmatprep.subr.mxu0 0.0
    %1213 = vmatpush1.msra.mxu0 0.0
    %1214 = vmatprep.mubr.f32.mxu0 0.0
    %1215 = vmatmul.mubr.f32.gmra.mrb[0].mxu0 %v1142
    %v1216 = vpop.f32.mrb[0].mxu0
    %v1217 = vadd.f32 0.0, %v1216
    %v1218 = vpop.f32.mrb[0].mxu0
    %v1219 = vadd.f32 0.0, %v1218
    %1220 = vdwg.mxu0
    %1221 = vmatprep.subr.mxu0 %v199
    %1222 = vmatpush1.msra.mxu0 %v198
    %1223 = vmatprep.subr.mxu0 %v203
    %1224 = vmatpush1.msra.mxu0 %v202
    %1225 = vmatprep.subr.mxu0 %v207
    %1226 = vmatpush1.msra.mxu0 %v206
    %1227 = vmatprep.subr.mxu0 %v211
    %1228 = vmatpush1.msra.mxu0 %v210
    %1229 = vmatprep.subr.mxu0 %v215
    %1230 = vmatpush1.msra.mxu0 %v214
    %1231 = vmatprep.subr.mxu0 %v219
    %1232 = vmatpush1.msra.mxu0 %v218
    %1233 = vmatprep.subr.mxu0 %v223
    %1234 = vmatpush1.msra.mxu0 %v222
    %1235 = vmatprep.subr.mxu0 %v227
    %1236 = vmatpush1.msra.mxu0 %v226
    %1237 = vmatprep.subr.mxu0 %v231
    %1238 = vmatpush1.msra.mxu0 %v230
    %1239 = vmatprep.subr.mxu0 %v235
    %1240 = vmatpush1.msra.mxu0 %v234
    %1241 = vmatprep.subr.mxu0 %v239
    %1242 = vmatpush1.msra.mxu0 %v238
    %1243 = vmatprep.subr.mxu0 %v243
    %1244 = vmatpush1.msra.mxu0 %v242
    %1245 = vmatprep.subr.mxu0 %v247
    %1246 = vmatpush1.msra.mxu0 %v246
    %1247 = vmatprep.subr.mxu0 %v251
    %1248 = vmatpush1.msra.mxu0 %v250
    %1249 = vmatprep.subr.mxu0 %v255
    %1250 = vmatpush1.msra.mxu0 %v254
    %1251 = vmatprep.subr.mxu0 %v259
    %1252 = vmatpush1.msra.mxu0 %v258
    %1253 = vmatprep.subr.mxu0 0.0
    %1254 = vmatpush1.msra.mxu0 0.0
    %1255 = vmatprep.subr.mxu0 0.0
    %1256 = vmatpush1.msra.mxu0 0.0
    %1257 = vmatprep.subr.mxu0 0.0
    %1258 = vmatpush1.msra.mxu0 0.0
    %1259 = vmatprep.subr.mxu0 0.0
    %1260 = vmatpush1.msra.mxu0 0.0
    %1261 = vmatprep.subr.mxu0 0.0
    %1262 = vmatpush1.msra.mxu0 0.0
    %1263 = vmatprep.subr.mxu0 0.0
    %1264 = vmatpush1.msra.mxu0 0.0
    %1265 = vmatprep.subr.mxu0 0.0
    %1266 = vmatpush1.msra.mxu0 0.0
    %1267 = vmatprep.subr.mxu0 0.0
    %1268 = vmatpush1.msra.mxu0 0.0
    %1269 = vmatprep.subr.mxu0 0.0
    %1270 = vmatpush1.msra.mxu0 0.0
    %1271 = vmatprep.subr.mxu0 0.0
    %1272 = vmatpush1.msra.mxu0 0.0
    %1273 = vmatprep.subr.mxu0 0.0
    %1274 = vmatpush1.msra.mxu0 0.0
    %1275 = vmatprep.subr.mxu0 0.0
    %1276 = vmatpush1.msra.mxu0 0.0
    %1277 = vmatprep.subr.mxu0 0.0
    %1278 = vmatpush1.msra.mxu0 0.0
    %1279 = vmatprep.subr.mxu0 0.0
    %1280 = vmatpush1.msra.mxu0 0.0
    %1281 = vmatprep.subr.mxu0 0.0
    %1282 = vmatpush1.msra.mxu0 0.0
    %1283 = vmatprep.subr.mxu0 0.0
    %1284 = vmatpush1.msra.mxu0 0.0
    %1285 = vmatprep.mubr.f32.mxu0 0.0
    %1286 = vmatmul.mubr.f32.gmra.mrb[0].mxu0 %v1142
    %v1287 = vpop.f32.mrb[0].mxu0
    %v1288 = vadd.f32 0.0, %v1287
    %v1289 = vpop.f32.mrb[0].mxu0
    %v1290 = vadd.f32 0.0, %v1289
    %1291 = vdwg.mxu0
    %v1292 = vadd.f32 %v1146, %v1217
    %v1293 = vadd.f32 %v1147, %v1219
    %v1294 = vadd.f32 %v1148, %v1288
    %v1295 = vadd.f32 %v1149, %v1290
    %v1296 = vxor.u32 %v1292, 2147483648
    %v1297 = vxor.u32 %v1293, 2147483648
    %v1298 = vxor.u32 %v1294, 2147483648
    %v1299 = vmul.f32 %v1296, 1.442695
    %v1300 = vpow.pop %v1299
    %v1301 = vmul.f32 %v1297, 1.442695
    %v1302 = vpow.pop %v1301
    %v1303 = vmul.f32 %v1298, 1.442695
    %v1304 = vpow.pop %v1303
    %v1305 = vadd.f32 %v1300, 1.0
    %v1306 = vadd.f32 %v1302, 1.0
    %v1307 = vadd.f32 %v1304, 1.0
    %v1308 = vrcp.pop %v1305
    %v1309 = vmul.f32 1.0, %v1308
    %v1310 = vrcp.pop %v1306
    %v1311 = vmul.f32 1.0, %v1310
    %v1312 = vrcp.pop %v1307
    %v1313 = vmul.f32 1.0, %v1312
    %v1314 = vtanh.pop %v1295
    %v1315 = vmul.f32 %v1314, %v1309
    %v1316 = vmul.f32 %v1140, %v1311
    %v1317 = vadd.f32 %v1315, %v1316
    %v1318 = vtanh.pop %v1317
    %v1319 = vmul.f32 %v1318, %v1313
    %s1320 = scalar_lea.vmem [#allocation6], 40
    %1321 = vst [vmem:[%s1320] sm:$0xff] %v1319
    %s1322 = scalar_lea.vmem %s0, 192
    %v1323 = vld [vmem:[%s1322] sm:$0xff]
    %v1324 = vld [vmem:[%s1322 + $0x8] sm:$0xff]
    %v1325 = vld [vmem:[%s1322 + $0x10] sm:$0xff]
    %v1326 = vld [vmem:[%s1322 + $0x18] sm:$0xff]
    %1327 = vmatprep.subr.mxu0 %v197
    %1328 = vmatpush1.msra.mxu0 %v196
    %1329 = vmatprep.subr.mxu0 %v201
    %1330 = vmatpush1.msra.mxu0 %v200
    %1331 = vmatprep.subr.mxu0 %v205
    %1332 = vmatpush1.msra.mxu0 %v204
    %1333 = vmatprep.subr.mxu0 %v209
    %1334 = vmatpush1.msra.mxu0 %v208
    %1335 = vmatprep.subr.mxu0 %v213
    %1336 = vmatpush1.msra.mxu0 %v212
    %1337 = vmatprep.subr.mxu0 %v217
    %1338 = vmatpush1.msra.mxu0 %v216
    %1339 = vmatprep.subr.mxu0 %v221
    %1340 = vmatpush1.msra.mxu0 %v220
    %1341 = vmatprep.subr.mxu0 %v225
    %1342 = vmatpush1.msra.mxu0 %v224
    %1343 = vmatprep.subr.mxu0 %v229
    %1344 = vmatpush1.msra.mxu0 %v228
    %1345 = vmatprep.subr.mxu0 %v233
    %1346 = vmatpush1.msra.mxu0 %v232
    %1347 = vmatprep.subr.mxu0 %v237
    %1348 = vmatpush1.msra.mxu0 %v236
    %1349 = vmatprep.subr.mxu0 %v241
    %1350 = vmatpush1.msra.mxu0 %v240
    %1351 = vmatprep.subr.mxu0 %v245
    %1352 = vmatpush1.msra.mxu0 %v244
    %1353 = vmatprep.subr.mxu0 %v249
    %1354 = vmatpush1.msra.mxu0 %v248
    %1355 = vmatprep.subr.mxu0 %v253
    %1356 = vmatpush1.msra.mxu0 %v252
    %1357 = vmatprep.subr.mxu0 %v257
    %1358 = vmatpush1.msra.mxu0 %v256
    %1359 = vmatprep.subr.mxu0 0.0
    %1360 = vmatpush1.msra.mxu0 0.0
    %1361 = vmatprep.subr.mxu0 0.0
    %1362 = vmatpush1.msra.mxu0 0.0
    %1363 = vmatprep.subr.mxu0 0.0
    %1364 = vmatpush1.msra.mxu0 0.0
    %1365 = vmatprep.subr.mxu0 0.0
    %1366 = vmatpush1.msra.mxu0 0.0
    %1367 = vmatprep.subr.mxu0 0.0
    %1368 = vmatpush1.msra.mxu0 0.0
    %1369 = vmatprep.subr.mxu0 0.0
    %1370 = vmatpush1.msra.mxu0 0.0
    %1371 = vmatprep.subr.mxu0 0.0
    %1372 = vmatpush1.msra.mxu0 0.0
    %1373 = vmatprep.subr.mxu0 0.0
    %1374 = vmatpush1.msra.mxu0 0.0
    %1375 = vmatprep.subr.mxu0 0.0
    %1376 = vmatpush1.msra.mxu0 0.0
    %1377 = vmatprep.subr.mxu0 0.0
    %1378 = vmatpush1.msra.mxu0 0.0
    %1379 = vmatprep.subr.mxu0 0.0
    %1380 = vmatpush1.msra.mxu0 0.0
    %1381 = vmatprep.subr.mxu0 0.0
    %1382 = vmatpush1.msra.mxu0 0.0
    %1383 = vmatprep.subr.mxu0 0.0
    %1384 = vmatpush1.msra.mxu0 0.0
    %1385 = vmatprep.subr.mxu0 0.0
    %1386 = vmatpush1.msra.mxu0 0.0
    %1387 = vmatprep.subr.mxu0 0.0
    %1388 = vmatpush1.msra.mxu0 0.0
    %1389 = vmatprep.subr.mxu0 0.0
    %1390 = vmatpush1.msra.mxu0 0.0
    %1391 = vmatprep.mubr.f32.mxu0 0.0
    %1392 = vmatmul.mubr.f32.gmra.mrb[0].mxu0 %v1319
    %v1393 = vpop.f32.mrb[0].mxu0
    %v1394 = vadd.f32 0.0, %v1393
    %v1395 = vpop.f32.mrb[0].mxu0
    %v1396 = vadd.f32 0.0, %v1395
    %1397 = vdwg.mxu0
    %1398 = vmatprep.subr.mxu0 %v199
    %1399 = vmatpush1.msra.mxu0 %v198
    %1400 = vmatprep.subr.mxu0 %v203
    %1401 = vmatpush1.msra.mxu0 %v202
    %1402 = vmatprep.subr.mxu0 %v207
    %1403 = vmatpush1.msra.mxu0 %v206
    %1404 = vmatprep.subr.mxu0 %v211
    %1405 = vmatpush1.msra.mxu0 %v210
    %1406 = vmatprep.subr.mxu0 %v215
    %1407 = vmatpush1.msra.mxu0 %v214
    %1408 = vmatprep.subr.mxu0 %v219
    %1409 = vmatpush1.msra.mxu0 %v218
    %1410 = vmatprep.subr.mxu0 %v223
    %1411 = vmatpush1.msra.mxu0 %v222
    %1412 = vmatprep.subr.mxu0 %v227
    %1413 = vmatpush1.msra.mxu0 %v226
    %1414 = vmatprep.subr.mxu0 %v231
    %1415 = vmatpush1.msra.mxu0 %v230
    %1416 = vmatprep.subr.mxu0 %v235
    %1417 = vmatpush1.msra.mxu0 %v234
    %1418 = vmatprep.subr.mxu0 %v239
    %1419 = vmatpush1.msra.mxu0 %v238
    %1420 = vmatprep.subr.mxu0 %v243
    %1421 = vmatpush1.msra.mxu0 %v242
    %1422 = vmatprep.subr.mxu0 %v247
    %1423 = vmatpush1.msra.mxu0 %v246
    %1424 = vmatprep.subr.mxu0 %v251
    %1425 = vmatpush1.msra.mxu0 %v250
    %1426 = vmatprep.subr.mxu0 %v255
    %1427 = vmatpush1.msra.mxu0 %v254
    %1428 = vmatprep.subr.mxu0 %v259
    %1429 = vmatpush1.msra.mxu0 %v258
    %1430 = vmatprep.subr.mxu0 0.0
    %1431 = vmatpush1.msra.mxu0 0.0
    %1432 = vmatprep.subr.mxu0 0.0
    %1433 = vmatpush1.msra.mxu0 0.0
    %1434 = vmatprep.subr.mxu0 0.0
    %1435 = vmatpush1.msra.mxu0 0.0
    %1436 = vmatprep.subr.mxu0 0.0
    %1437 = vmatpush1.msra.mxu0 0.0
    %1438 = vmatprep.subr.mxu0 0.0
    %1439 = vmatpush1.msra.mxu0 0.0
    %1440 = vmatprep.subr.mxu0 0.0
    %1441 = vmatpush1.msra.mxu0 0.0
    %1442 = vmatprep.subr.mxu0 0.0
    %1443 = vmatpush1.msra.mxu0 0.0
    %1444 = vmatprep.subr.mxu0 0.0
    %1445 = vmatpush1.msra.mxu0 0.0
    %1446 = vmatprep.subr.mxu0 0.0
    %1447 = vmatpush1.msra.mxu0 0.0
    %1448 = vmatprep.subr.mxu0 0.0
    %1449 = vmatpush1.msra.mxu0 0.0
    %1450 = vmatprep.subr.mxu0 0.0
    %1451 = vmatpush1.msra.mxu0 0.0
    %1452 = vmatprep.subr.mxu0 0.0
    %1453 = vmatpush1.msra.mxu0 0.0
    %1454 = vmatprep.subr.mxu0 0.0
    %1455 = vmatpush1.msra.mxu0 0.0
    %1456 = vmatprep.subr.mxu0 0.0
    %1457 = vmatpush1.msra.mxu0 0.0
    %1458 = vmatprep.subr.mxu0 0.0
    %1459 = vmatpush1.msra.mxu0 0.0
    %1460 = vmatprep.subr.mxu0 0.0
    %1461 = vmatpush1.msra.mxu0 0.0
    %1462 = vmatprep.mubr.f32.mxu0 0.0
    %1463 = vmatmul.mubr.f32.gmra.mrb[0].mxu0 %v1319
    %v1464 = vpop.f32.mrb[0].mxu0
    %v1465 = vadd.f32 0.0, %v1464
    %v1466 = vpop.f32.mrb[0].mxu0
    %v1467 = vadd.f32 0.0, %v1466
    %1468 = vdwg.mxu0
    %v1469 = vadd.f32 %v1323, %v1394
    %v1470 = vadd.f32 %v1324, %v1396
    %v1471 = vadd.f32 %v1325, %v1465
    %v1472 = vadd.f32 %v1326, %v1467
    %v1473 = vxor.u32 %v1469, 2147483648
    %v1474 = vxor.u32 %v1470, 2147483648
    %v1475 = vxor.u32 %v1471, 2147483648
    %v1476 = vmul.f32 %v1473, 1.442695
    %v1477 = vpow.pop %v1476
    %v1478 = vmul.f32 %v1474, 1.442695
    %v1479 = vpow.pop %v1478
    %v1480 = vmul.f32 %v1475, 1.442695
    %v1481 = vpow.pop %v1480
    %v1482 = vadd.f32 %v1477, 1.0
    %v1483 = vadd.f32 %v1479, 1.0
    %v1484 = vadd.f32 %v1481, 1.0
    %v1485 = vrcp.pop %v1482
    %v1486 = vmul.f32 1.0, %v1485
    %v1487 = vrcp.pop %v1483
    %v1488 = vmul.f32 1.0, %v1487
    %v1489 = vrcp.pop %v1484
    %v1490 = vmul.f32 1.0, %v1489
    %v1491 = vtanh.pop %v1472
    %v1492 = vmul.f32 %v1491, %v1486
    %v1493 = vmul.f32 %v1317, %v1488
    %v1494 = vadd.f32 %v1492, %v1493
    %v1495 = vtanh.pop %v1494
    %v1496 = vmul.f32 %v1495, %v1490
    %s1497 = scalar_lea.vmem [#allocation6], 48
    %1498 = vst [vmem:[%s1497] sm:$0xff] %v1496
    %s1499 = scalar_lea.vmem %s0, 224
    %v1500 = vld [vmem:[%s1499] sm:$0xff]
    %v1501 = vld [vmem:[%s1499 + $0x8] sm:$0xff]
    %v1502 = vld [vmem:[%s1499 + $0x10] sm:$0xff]
    %v1503 = vld [vmem:[%s1499 + $0x18] sm:$0xff]
    %1504 = vmatprep.subr.mxu0 %v197
    %1505 = vmatpush1.msra.mxu0 %v196
    %1506 = vmatprep.subr.mxu0 %v201
    %1507 = vmatpush1.msra.mxu0 %v200
    %1508 = vmatprep.subr.mxu0 %v205
    %1509 = vmatpush1.msra.mxu0 %v204
    %1510 = vmatprep.subr.mxu0 %v209
    %1511 = vmatpush1.msra.mxu0 %v208
    %1512 = vmatprep.subr.mxu0 %v213
    %1513 = vmatpush1.msra.mxu0 %v212
    %1514 = vmatprep.subr.mxu0 %v217
    %1515 = vmatpush1.msra.mxu0 %v216
    %1516 = vmatprep.subr.mxu0 %v221
    %1517 = vmatpush1.msra.mxu0 %v220
    %1518 = vmatprep.subr.mxu0 %v225
    %1519 = vmatpush1.msra.mxu0 %v224
    %1520 = vmatprep.subr.mxu0 %v229
    %1521 = vmatpush1.msra.mxu0 %v228
    %1522 = vmatprep.subr.mxu0 %v233
    %1523 = vmatpush1.msra.mxu0 %v232
    %1524 = vmatprep.subr.mxu0 %v237
    %1525 = vmatpush1.msra.mxu0 %v236
    %1526 = vmatprep.subr.mxu0 %v241
    %1527 = vmatpush1.msra.mxu0 %v240
    %1528 = vmatprep.subr.mxu0 %v245
    %1529 = vmatpush1.msra.mxu0 %v244
    %1530 = vmatprep.subr.mxu0 %v249
    %1531 = vmatpush1.msra.mxu0 %v248
    %1532 = vmatprep.subr.mxu0 %v253
    %1533 = vmatpush1.msra.mxu0 %v252
    %1534 = vmatprep.subr.mxu0 %v257
    %1535 = vmatpush1.msra.mxu0 %v256
    %1536 = vmatprep.subr.mxu0 0.0
    %1537 = vmatpush1.msra.mxu0 0.0
    %1538 = vmatprep.subr.mxu0 0.0
    %1539 = vmatpush1.msra.mxu0 0.0
    %1540 = vmatprep.subr.mxu0 0.0
    %1541 = vmatpush1.msra.mxu0 0.0
    %1542 = vmatprep.subr.mxu0 0.0
    %1543 = vmatpush1.msra.mxu0 0.0
    %1544 = vmatprep.subr.mxu0 0.0
    %1545 = vmatpush1.msra.mxu0 0.0
    %1546 = vmatprep.subr.mxu0 0.0
    %1547 = vmatpush1.msra.mxu0 0.0
    %1548 = vmatprep.subr.mxu0 0.0
    %1549 = vmatpush1.msra.mxu0 0.0
    %1550 = vmatprep.subr.mxu0 0.0
    %1551 = vmatpush1.msra.mxu0 0.0
    %1552 = vmatprep.subr.mxu0 0.0
    %1553 = vmatpush1.msra.mxu0 0.0
    %1554 = vmatprep.subr.mxu0 0.0
    %1555 = vmatpush1.msra.mxu0 0.0
    %1556 = vmatprep.subr.mxu0 0.0
    %1557 = vmatpush1.msra.mxu0 0.0
    %1558 = vmatprep.subr.mxu0 0.0
    %1559 = vmatpush1.msra.mxu0 0.0
    %1560 = vmatprep.subr.mxu0 0.0
    %1561 = vmatpush1.msra.mxu0 0.0
    %1562 = vmatprep.subr.mxu0 0.0
    %1563 = vmatpush1.msra.mxu0 0.0
    %1564 = vmatprep.subr.mxu0 0.0
    %1565 = vmatpush1.msra.mxu0 0.0
    %1566 = vmatprep.subr.mxu0 0.0
    %1567 = vmatpush1.msra.mxu0 0.0
    %1568 = vmatprep.mubr.f32.mxu0 0.0
    %1569 = vmatmul.mubr.f32.gmra.mrb[0].mxu0 %v1496
    %v1570 = vpop.f32.mrb[0].mxu0
    %v1571 = vadd.f32 0.0, %v1570
    %v1572 = vpop.f32.mrb[0].mxu0
    %v1573 = vadd.f32 0.0, %v1572
    %1574 = vdwg.mxu0
    %1575 = vmatprep.subr.mxu0 %v199
    %1576 = vmatpush1.msra.mxu0 %v198
    %1577 = vmatprep.subr.mxu0 %v203
    %1578 = vmatpush1.msra.mxu0 %v202
    %1579 = vmatprep.subr.mxu0 %v207
    %1580 = vmatpush1.msra.mxu0 %v206
    %1581 = vmatprep.subr.mxu0 %v211
    %1582 = vmatpush1.msra.mxu0 %v210
    %1583 = vmatprep.subr.mxu0 %v215
    %1584 = vmatpush1.msra.mxu0 %v214
    %1585 = vmatprep.subr.mxu0 %v219
    %1586 = vmatpush1.msra.mxu0 %v218
    %1587 = vmatprep.subr.mxu0 %v223
    %1588 = vmatpush1.msra.mxu0 %v222
    %1589 = vmatprep.subr.mxu0 %v227
    %1590 = vmatpush1.msra.mxu0 %v226
    %1591 = vmatprep.subr.mxu0 %v231
    %1592 = vmatpush1.msra.mxu0 %v230
    %1593 = vmatprep.subr.mxu0 %v235
    %1594 = vmatpush1.msra.mxu0 %v234
    %1595 = vmatprep.subr.mxu0 %v239
    %1596 = vmatpush1.msra.mxu0 %v238
    %1597 = vmatprep.subr.mxu0 %v243
    %1598 = vmatpush1.msra.mxu0 %v242
    %1599 = vmatprep.subr.mxu0 %v247
    %1600 = vmatpush1.msra.mxu0 %v246
    %1601 = vmatprep.subr.mxu0 %v251
    %1602 = vmatpush1.msra.mxu0 %v250
    %1603 = vmatprep.subr.mxu0 %v255
    %1604 = vmatpush1.msra.mxu0 %v254
    %1605 = vmatprep.subr.mxu0 %v259
    %1606 = vmatpush1.msra.mxu0 %v258
    %1607 = vmatprep.subr.mxu0 0.0
    %1608 = vmatpush1.msra.mxu0 0.0
    %1609 = vmatprep.subr.mxu0 0.0
    %1610 = vmatpush1.msra.mxu0 0.0
    %1611 = vmatprep.subr.mxu0 0.0
    %1612 = vmatpush1.msra.mxu0 0.0
    %1613 = vmatprep.subr.mxu0 0.0
    %1614 = vmatpush1.msra.mxu0 0.0
    %1615 = vmatprep.subr.mxu0 0.0
    %1616 = vmatpush1.msra.mxu0 0.0
    %1617 = vmatprep.subr.mxu0 0.0
    %1618 = vmatpush1.msra.mxu0 0.0
    %1619 = vmatprep.subr.mxu0 0.0
    %1620 = vmatpush1.msra.mxu0 0.0
    %1621 = vmatprep.subr.mxu0 0.0
    %1622 = vmatpush1.msra.mxu0 0.0
    %1623 = vmatprep.subr.mxu0 0.0
    %1624 = vmatpush1.msra.mxu0 0.0
    %1625 = vmatprep.subr.mxu0 0.0
    %1626 = vmatpush1.msra.mxu0 0.0
    %1627 = vmatprep.subr.mxu0 0.0
    %1628 = vmatpush1.msra.mxu0 0.0
    %1629 = vmatprep.subr.mxu0 0.0
    %1630 = vmatpush1.msra.mxu0 0.0
    %1631 = vmatprep.subr.mxu0 0.0
    %1632 = vmatpush1.msra.mxu0 0.0
    %1633 = vmatprep.subr.mxu0 0.0
    %1634 = vmatpush1.msra.mxu0 0.0
    %1635 = vmatprep.subr.mxu0 0.0
    %1636 = vmatpush1.msra.mxu0 0.0
    %1637 = vmatprep.subr.mxu0 0.0
    %1638 = vmatpush1.msra.mxu0 0.0
    %1639 = vmatprep.mubr.f32.mxu0 0.0
    %1640 = vmatmul.mubr.f32.gmra.mrb[0].mxu0 %v1496
    %v1641 = vpop.f32.mrb[0].mxu0
    %v1642 = vadd.f32 0.0, %v1641
    %v1643 = vpop.f32.mrb[0].mxu0
    %v1644 = vadd.f32 0.0, %v1643
    %1645 = vdwg.mxu0
    %v1646 = vadd.f32 %v1500, %v1571
    %v1647 = vadd.f32 %v1501, %v1573
    %v1648 = vadd.f32 %v1502, %v1642
    %v1649 = vadd.f32 %v1503, %v1644
    %v1650 = vxor.u32 %v1646, 2147483648
    %v1651 = vxor.u32 %v1647, 2147483648
    %v1652 = vxor.u32 %v1648, 2147483648
    %v1653 = vmul.f32 %v1650, 1.442695
    %v1654 = vpow.pop %v1653
    %v1655 = vmul.f32 %v1651, 1.442695
    %v1656 = vpow.pop %v1655
    %v1657 = vmul.f32 %v1652, 1.442695
    %v1658 = vpow.pop %v1657
    %v1659 = vadd.f32 %v1654, 1.0
    %v1660 = vadd.f32 %v1656, 1.0
    %v1661 = vadd.f32 %v1658, 1.0
    %v1662 = vrcp.pop %v1659
    %v1663 = vmul.f32 1.0, %v1662
    %v1664 = vrcp.pop %v1660
    %v1665 = vmul.f32 1.0, %v1664
    %v1666 = vrcp.pop %v1661
    %v1667 = vmul.f32 1.0, %v1666
    %v1668 = vtanh.pop %v1649
    %v1669 = vmul.f32 %v1668, %v1663
    %v1670 = vmul.f32 %v1494, %v1665
    %v1671 = vadd.f32 %v1669, %v1670
    %v1672 = vtanh.pop %v1671
    %v1673 = vmul.f32 %v1672, %v1667
    %s1674 = scalar_lea.vmem [#allocation6], 56
    %1675 = vst [vmem:[%s1674] sm:$0xff] %v1673
    %1676 = vst [vmem:[#allocation3] sm:$0xff] %v1673
    %1677 = vst [vmem:[#allocation4] sm:$0xff] %v1671
    // Predicated region
    $region52: #{lstm_forward.1} parent=1 // pred_check
      _
    $region53: #{lstm_forward.1} parent=1 // pred_check_branch
      %1679 = sbr.rel (0) target = $region55
    $region54: #{lstm_forward.1} parent=1 // pred_region
      %s1681 = ssub.s32 1024, 1024
      %1682 = vsyncadd [#allocation7], %s1681
      %s1683 = sshll.u32 [#allocation6], 4
      %s1684 = int_to_ptr.vmem [resolvable:$true] %s1683
      %1689 = dma.vmem_to_hbm [thread:$0]  %s1684, 1024, %s4, [#allocation7], 128, 128, 8
    $region55: #{lstm_forward.1} parent=1 // pred_fallthru
      _
    // Predicated region
    $region56: #{lstm_forward.1} parent=1 // pred_check
      _
    $region57: #{lstm_forward.1} parent=1 // pred_check_branch
      %1691 = sbr.rel (0) target = $region59
    $region58: #{lstm_forward.1} parent=1 // pred_region
      %1692 = dma.done [#allocation7], 1024
    $region59: #{lstm_forward.1} parent=1 // pred_fallthru
      _
    %1693 = vsyncpa [#allocation7], 1
  %1694 = vsyncmov [#allocation5]
  %s1695 = vpop.sfrf %1694
  %p1696 = scmp.eq.s32.totalorder %s1695, 0
  %p1697 = pneg %p1696
  %1699 = shalt.err (%p1697)

</llo_original>
